<compile_context>
chip_gen: v5e
topology: v5e:2x2
jax: 0.10.0
libtpu: 0.0.40
codegen_flags: <defaults>
</compile_context>

<pallas_src>
import math

import jax
import jax.numpy as jnp
from jax.experimental import pallas as pl
from jax.experimental.pallas import tpu as pltpu


def _discriminator_kernel(x_ref, w1_ref, b1_ref, w2_ref, b2_ref,
                          w3_ref, b3_ref, out_ref, h1_acc):
    """Fused 3-layer MLP on one (tb, D) batch tile, K-tiled over layer 1.

    Grid = (batch_tiles, k_tiles).  x_ref is an f32 (tb, dk) tile (cast to
    bf16 in-kernel); w1_ref is the matching bf16 (dk, 512) slice; all other
    operands are grid-constant.  h1_acc is an f32 VMEM accumulator.
    """
    k = pl.program_id(1)

    @pl.when(k == 0)
    def _init():
        h1_acc[...] = jnp.zeros_like(h1_acc)

    # Layer 1 partial product: in-kernel f32->bf16 cast (no separate HBM cast
    # pass in the wrapper), MXU matmul with f32 accumulation.
    x = x_ref[...].astype(jnp.bfloat16)
    h1_acc[...] += jnp.dot(x, w1_ref[...], preferred_element_type=jnp.float32)

    @pl.when(k == pl.num_programs(1) - 1)
    def _finalize():
        # Layer 1 epilogue: bias + LeakyReLU(0.2) in f32 on the VPU.
        h1 = h1_acc[...] + b1_ref[...]
        h1 = jnp.where(h1 > 0, h1, 0.2 * h1)

        # Layer 2: Linear(512, 256) + LeakyReLU(0.2) -- MXU, f32 accumulate.
        h2 = jnp.dot(h1.astype(jnp.bfloat16), w2_ref[...],
                     preferred_element_type=jnp.float32)
        h2 = h2 + b2_ref[...]
        h2 = jnp.where(h2 > 0, h2, 0.2 * h2)

        # Layer 3: Linear(256, 1) + Sigmoid.  N=1 is kept off the MXU:
        # VPU multiply + XLU lane reduction, EUP exp / approx reciprocal.
        h3 = jnp.sum(h2 * w3_ref[...], axis=-1, keepdims=True) + b3_ref[...]
        # TODO(synk): a lane-dense epilogue ((tb,1)->(1,tb) transpose and a
        # (1,B) output block) would replace ~tb/8 sparse EUP pushes and the
        # masked store with 2 dense vregs; kept in the proven (tb,1) layout
        # here to avoid relying on a degenerate-minor-dim relayout in Mosaic.
        sig = pl.reciprocal(1.0 + jnp.exp(-h3), approx=True)
        out_ref[...] = sig.astype(out_ref.dtype)


def _round_up(x, m):
    return ((x + m - 1) // m) * m


def _choose_batch_tile(b, max_tile_b):
    if b <= 128:
        return b            # single full-batch tile (block == full dim: legal)
    # >= 2 grid steps lets dimension_semantics=("parallel", ...) shard the
    # batch over v7x's two TensorCores; multiples of 128 keep blocks aligned;
    # large tiles amortize the per-grid-step overhead on v6e/v5e.
    tb = _round_up(pl.cdiv(b, 2), 128)
    return min(max_tile_b, tb)


def _choose_k_tile(d, max_dk=2048):
    if d <= max_dk:
        return d
    # Largest multiple of 128 that divides d: no partial K blocks (padding
    # garbage on a reduction axis would corrupt the accumulation).
    for cand in range(max_dk, 0, -128):
        if d % cand == 0:
            return cand
    # TODO(synk): pad D to a multiple of 128 in the wrapper instead of falling
    # back to a fully-resident layer-1 weight for awkward D values.
    return d


def _vmem_capacity_bytes():
    try:
        info = pltpu.get_tpu_info()
        return int(getattr(info, "vmem_capacity_bytes", 64 << 20))
    except Exception:
        return 64 << 20     # v7x (smallest per-TC VMEM) as conservative default


def discriminator_forward(img, params, *, max_tile_b=1024):
    """img: (B, C, H, W) float32 -> validity: (B, 1) float32."""
    b = img.shape[0]
    x = img.reshape(b, -1)                  # same as torch .view(B, -1); stays f32
    d = x.shape[1]

    w1, b1, w2, b2, w3, b3 = params
    h1_dim, h2_dim = w1.shape[1], w2.shape[1]
    w3_row = w3.reshape(1, -1).astype(jnp.float32)

    # Weights are tiny -> cast once at the boundary; the big x stream stays
    # f32 and is cast per-tile inside the kernel (no extra HBM pass).
    w1_bf16 = w1.astype(jnp.bfloat16)
    w2_bf16 = w2.astype(jnp.bfloat16)

    tb = _choose_batch_tile(b, max_tile_b)
    dk = _choose_k_tile(d)
    grid = (pl.cdiv(b, tb), pl.cdiv(d, dk))

    # ---- VMEM budget.  Budget every pipelined operand (including the
    # grid-constant weights/biases) as double-buffered so the limit is safe
    # even if the compiler does not single-buffer them.
    x_tile_bytes = tb * dk * 4
    w1_tile_bytes = dk * h1_dim * 2
    const_bytes = (h1_dim * h2_dim * 2                  # w2 (bf16)
                   + (h1_dim + 2 * h2_dim + 1) * 4)     # b1, b2, w3 row, b3
    acc_bytes = tb * h1_dim * 4
    out_tile_bytes = tb * 4
    vmem_needed = (2 * x_tile_bytes + 2 * w1_tile_bytes + 2 * const_bytes
                   + acc_bytes + 2 * out_tile_bytes)

    vmem_cap = _vmem_capacity_bytes()
    vmem_limit = min(max(vmem_needed + (4 << 20), 32 << 20),
                     int(0.80 * vmem_cap))
    vmem_limit = max(vmem_limit, vmem_needed + (2 << 20))   # never below the need
    vmem_limit = min(vmem_limit, vmem_cap)

    # ---- Cost estimate so XLA schedules the custom call sensibly.
    flops = 2 * b * (d * h1_dim + h1_dim * h2_dim + h2_dim)
    bytes_accessed = (b * d * 4                       # f32 x stream
                      + grid[0] * d * h1_dim * 2      # w1 re-streamed per batch tile
                      + const_bytes + b * 4)
    cost = pl.CostEstimate(flops=int(flops), transcendentals=2 * b,
                           bytes_accessed=int(bytes_accessed))

    out = pl.pallas_call(
        _discriminator_kernel,
        out_shape=jax.ShapeDtypeStruct((b, 1), jnp.float32),
        grid=grid,
        in_specs=[
            pl.BlockSpec((tb, dk), lambda i, k: (i, k)),           # x tile (f32)
            pl.BlockSpec((dk, h1_dim), lambda i, k: (k, 0)),       # w1 K-slice
            pl.BlockSpec((1, h1_dim), lambda i, k: (0, 0)),        # b1
            pl.BlockSpec((h1_dim, h2_dim), lambda i, k: (0, 0)),   # w2 (resident)
            pl.BlockSpec((1, h2_dim), lambda i, k: (0, 0)),        # b2
            pl.BlockSpec((1, h2_dim), lambda i, k: (0, 0)),        # w3 row
            pl.BlockSpec((1, 1), lambda i, k: (0, 0)),             # b3
        ],
        out_specs=pl.BlockSpec((tb, 1), lambda i, k: (i, 0)),      # validity tile
        scratch_shapes=[pltpu.VMEM((tb, h1_dim), jnp.float32)],    # layer-1 acc
        compiler_params=pltpu.CompilerParams(
            dimension_semantics=("parallel", "arbitrary"),
            vmem_limit_bytes=int(vmem_limit),
        ),
        cost_estimate=cost,
    )(x, w1_bf16, b1, w2_bf16, b2, w3_row, b3)
    return out


def init_params(key, input_dim):
    """Deterministic init mimicking torch nn.Linear default U[-1/sqrt(fan_in), +].

    Weights stored as (in_features, out_features), kept in f32 here; the
    matmul weights are cast to bf16 at the pallas_call boundary.
    """
    dims = [(input_dim, 512), (512, 256), (256, 1)]
    params = []
    for (fan_in, fan_out) in dims:
        key, kw, kb = jax.random.split(key, 3)
        bound = 1.0 / math.sqrt(fan_in)
        w = jax.random.uniform(kw, (fan_in, fan_out), jnp.float32, -bound, bound)
        bb = jax.random.uniform(kb, (1, fan_out), jnp.float32, -bound, bound)
        params += [w, bb]
    return tuple(params)


def reference_forward(img, params):
    """Plain-JAX f32 reference for correctness checking."""
    x = img.reshape(img.shape[0], -1)
    w1, b1, w2, b2, w3, b3 = params
    h1 = x @ w1 + b1
    h1 = jnp.where(h1 > 0, h1, 0.2 * h1)
    h2 = h1 @ w2 + b2
    h2 = jnp.where(h2 > 0, h2, 0.2 * h2)
    h3 = h2 @ w3 + b3
    return jax.nn.sigmoid(h3)


if __name__ == "__main__":
    key = jax.random.PRNGKey(0)
    k_img, k_params = jax.random.split(key)

    # Small NCHW image batch: (B=2, C=4, H=16, W=16) -> input_shape = 1024
    B, C, H, W = 2, 4, 16, 16
    img = jax.random.normal(k_img, (B, C, H, W), jnp.float32)

    params = init_params(k_params, C * H * W)

    validity = discriminator_forward(img, params)
    validity = jax.block_until_ready(validity)

    ref = reference_forward(img, params)
    assert validity.shape == (B, 1)
    # Tolerance loosened vs a pure-f32 path: MXU inputs are bf16 (f32
    # accumulation) and the sigmoid uses the approximate EUP reciprocal.
    assert jnp.allclose(validity, ref, atol=2e-2, rtol=2e-2), (validity, ref)

    print("KERNEL_OK")
</pallas_src>

<mosaic_0001>
module attributes {stable_mosaic.version = 11 : i64} {
  func.func @_discriminator_kernel(%arg0: i32, %arg1: i32, %arg2: memref<2x1024xf32, #tpu.memory_space<vmem>>, %arg3: memref<1024x512xbf16, #tpu.memory_space<vmem>>, %arg4: memref<1x512xf32, #tpu.memory_space<vmem>>, %arg5: memref<512x256xbf16, #tpu.memory_space<vmem>>, %arg6: memref<1x256xf32, #tpu.memory_space<vmem>>, %arg7: memref<1x256xf32, #tpu.memory_space<vmem>>, %arg8: memref<1x1xf32, #tpu.memory_space<vmem>>, %arg9: memref<2x1xf32, #tpu.memory_space<vmem>>, %arg10: memref<2x512xf32, #tpu.memory_space<vmem>>) attributes {dimension_semantics = [#tpu.dimension_semantics<parallel>, #tpu.dimension_semantics<arbitrary>], iteration_bounds = array<i64: 1, 1>, scalar_prefetch = 0 : i64, scratch_operands = 1 : i64, tpu.core_type = #tpu.core_type<tc>, window_params = [{transform_indices = @transform_0, window_bounds = array<i64: 2, 1024>}, {transform_indices = @transform_1, window_bounds = array<i64: 1024, 512>}, {pipeline_mode = #tpu.pipeline_mode<synchronous>, transform_indices = @transform_2, window_bounds = array<i64: 1, 512>}, {pipeline_mode = #tpu.pipeline_mode<synchronous>, transform_indices = @transform_3, window_bounds = array<i64: 512, 256>}, {pipeline_mode = #tpu.pipeline_mode<synchronous>, transform_indices = @transform_4, window_bounds = array<i64: 1, 256>}, {pipeline_mode = #tpu.pipeline_mode<synchronous>, transform_indices = @transform_5, window_bounds = array<i64: 1, 256>}, {pipeline_mode = #tpu.pipeline_mode<synchronous>, transform_indices = @transform_6, window_bounds = array<i64: 1, 1>}, {transform_indices = @transform_7, window_bounds = array<i64: 2, 1>}]} {
    %c0_i32 = arith.constant 0 : i32
    %0 = arith.cmpi eq, %arg1, %c0_i32 : i32
    %1 = arith.extui %0 : i1 to i32
    %c0_i32_0 = arith.constant 0 : i32
    %2 = arith.cmpi ne, %1, %c0_i32_0 : i32
    scf.if %2 {
      %cst_10 = arith.constant 0.000000e+00 : f32
      %13 = vector.broadcast %cst_10 : f32 to vector<2x512xf32>
      %c0_11 = arith.constant 0 : index
      %c0_12 = arith.constant 0 : index
      %14 = vector.load %arg10[%c0_11, %c0_12] : memref<2x512xf32, #tpu.memory_space<vmem>>, vector<2x512xf32>
      tpu.vector_store %arg10[%c0_11, %c0_12], %13 {strides = array<i32>} : memref<2x512xf32, #tpu.memory_space<vmem>>, vector<2x512xf32>,
    } else {
    }
    %c0 = arith.constant 0 : index
    %c0_1 = arith.constant 0 : index
    %3 = vector.load %arg2[%c0, %c0_1] : memref<2x1024xf32, #tpu.memory_space<vmem>>, vector<2x1024xf32>
    %4 = arith.truncf %3 : vector<2x1024xf32> to vector<2x1024xbf16>
    %c0_2 = arith.constant 0 : index
    %c0_3 = arith.constant 0 : index
    %5 = vector.load %arg10[%c0_2, %c0_3] : memref<2x512xf32, #tpu.memory_space<vmem>>, vector<2x512xf32>
    %c0_4 = arith.constant 0 : index
    %c0_5 = arith.constant 0 : index
    %6 = vector.load %arg3[%c0_4, %c0_5] : memref<1024x512xbf16, #tpu.memory_space<vmem>>, vector<1024x512xbf16>
    %cst = arith.constant dense<0.000000e+00> : vector<2x512xf32>
    %7 = tpu.matmul %4, %6, %cst {dimension_numbers = #tpu.dot_dimension_numbers<[1], [0], [0], [1], [0, 0, 1, 1], [], []>} : vector<2x1024xbf16>, vector<1024x512xbf16>, vector<2x512xf32> -> vector<2x512xf32>
    %8 = arith.addf %5, %7 : vector<2x512xf32>
    %c0_6 = arith.constant 0 : index
    %c0_7 = arith.constant 0 : index
    %9 = vector.load %arg10[%c0_6, %c0_7] : memref<2x512xf32, #tpu.memory_space<vmem>>, vector<2x512xf32>
    tpu.vector_store %arg10[%c0_6, %c0_7], %8 {strides = array<i32>} : memref<2x512xf32, #tpu.memory_space<vmem>>, vector<2x512xf32>,
    %c0_i32_8 = arith.constant 0 : i32
    %10 = arith.cmpi eq, %arg1, %c0_i32_8 : i32
    %11 = arith.extui %10 : i1 to i32
    %c0_i32_9 = arith.constant 0 : i32
    %12 = arith.cmpi ne, %11, %c0_i32_9 : i32
    scf.if %12 {
      %c0_10 = arith.constant 0 : index
      %c0_11 = arith.constant 0 : index
      %13 = vector.load %arg10[%c0_10, %c0_11] : memref<2x512xf32, #tpu.memory_space<vmem>>, vector<2x512xf32>
      %c0_12 = arith.constant 0 : index
      %c0_13 = arith.constant 0 : index
      %14 = vector.load %arg4[%c0_12, %c0_13] : memref<1x512xf32, #tpu.memory_space<vmem>>, vector<1x512xf32>
      %15 = vector.broadcast %14 : vector<1x512xf32> to vector<2x512xf32>
      %16 = arith.addf %13, %15 : vector<2x512xf32>
      %cst_14 = arith.constant 0.000000e+00 : f32
      %17 = vector.broadcast %cst_14 : f32 to vector<2x512xf32>
      %18 = arith.cmpf ogt, %16, %17 : vector<2x512xf32>
      %cst_15 = arith.constant 2.000000e-01 : f32
      %19 = vector.broadcast %cst_15 : f32 to vector<2x512xf32>
      %20 = arith.mulf %19, %16 : vector<2x512xf32>
      %21 = arith.select %18, %16, %20 : vector<2x512xi1>, vector<2x512xf32>
      %22 = arith.truncf %21 : vector<2x512xf32> to vector<2x512xbf16>
      %c0_16 = arith.constant 0 : index
      %c0_17 = arith.constant 0 : index
      %23 = vector.load %arg5[%c0_16, %c0_17] : memref<512x256xbf16, #tpu.memory_space<vmem>>, vector<512x256xbf16>
      %cst_18 = arith.constant dense<0.000000e+00> : vector<2x256xf32>
      %24 = tpu.matmul %22, %23, %cst_18 {dimension_numbers = #tpu.dot_dimension_numbers<[1], [0], [0], [1], [0, 0, 1, 1], [], []>} : vector<2x512xbf16>, vector<512x256xbf16>, vector<2x256xf32> -> vector<2x256xf32>
      %c0_19 = arith.constant 0 : index
      %c0_20 = arith.constant 0 : index
      %25 = vector.load %arg6[%c0_19, %c0_20] : memref<1x256xf32, #tpu.memory_space<vmem>>, vector<1x256xf32>
      %26 = vector.broadcast %25 : vector<1x256xf32> to vector<2x256xf32>
      %27 = arith.addf %24, %26 : vector<2x256xf32>
      %cst_21 = arith.constant 0.000000e+00 : f32
      %28 = vector.broadcast %cst_21 : f32 to vector<2x256xf32>
      %29 = arith.cmpf ogt, %27, %28 : vector<2x256xf32>
      %cst_22 = arith.constant 2.000000e-01 : f32
      %30 = vector.broadcast %cst_22 : f32 to vector<2x256xf32>
      %31 = arith.mulf %30, %27 : vector<2x256xf32>
      %32 = arith.select %29, %27, %31 : vector<2x256xi1>, vector<2x256xf32>
      %c0_23 = arith.constant 0 : index
      %c0_24 = arith.constant 0 : index
      %33 = vector.load %arg7[%c0_23, %c0_24] : memref<1x256xf32, #tpu.memory_space<vmem>>, vector<1x256xf32>
      %34 = vector.broadcast %33 : vector<1x256xf32> to vector<2x256xf32>
      %35 = arith.mulf %32, %34 : vector<2x256xf32>
      %cst_25 = arith.constant dense<0.000000e+00> : vector<2xf32>
      %36 = vector.multi_reduction <add>, %35, %cst_25 [1] : vector<2x256xf32> to vector<2xf32>
      %37 = vector.shape_cast %36 : vector<2xf32> to vector<2x1xf32>
      %c0_26 = arith.constant 0 : index
      %c0_27 = arith.constant 0 : index
      %38 = vector.load %arg8[%c0_26, %c0_27] : memref<1x1xf32, #tpu.memory_space<vmem>>, vector<1x1xf32>
      %39 = vector.broadcast %38 : vector<1x1xf32> to vector<2x1xf32>
      %40 = arith.addf %37, %39 : vector<2x1xf32>
      %cst_28 = arith.constant 0.000000e+00 : f32
      %41 = vector.broadcast %cst_28 : f32 to vector<2x1xf32>
      %42 = arith.subf %41, %40 : vector<2x1xf32>
      %43 = math.exp %42 : vector<2x1xf32>
      %cst_29 = arith.constant 1.000000e+00 : f32
      %44 = vector.broadcast %cst_29 : f32 to vector<2x1xf32>
      %45 = arith.addf %44, %43 : vector<2x1xf32>
      %46 = tpu.reciprocal %45 {approx = true} : vector<2x1xf32> -> vector<2x1xf32>
      %c0_30 = arith.constant 0 : index
      %c0_31 = arith.constant 0 : index
      %47 = vector.load %arg9[%c0_30, %c0_31] : memref<2x1xf32, #tpu.memory_space<vmem>>, vector<2x1xf32>
      tpu.vector_store %arg9[%c0_30, %c0_31], %46 {strides = array<i32>} : memref<2x1xf32, #tpu.memory_space<vmem>>, vector<2x1xf32>,
    } else {
    }
    return
  }
  func.func @transform_0(%arg0: i32, %arg1: i32) -> (i32, i32) {
    %c0_i32 = arith.constant 0 : i32
    return %arg0, %arg1 : i32, i32
  }
  func.func @transform_1(%arg0: i32, %arg1: i32) -> (i32, i32) {
    %c0_i32 = arith.constant 0 : i32
    %c0_i32_0 = arith.constant 0 : i32
    return %arg1, %c0_i32 : i32, i32
  }
  func.func @transform_2(%arg0: i32, %arg1: i32) -> (i32, i32) {
    %c0_i32 = arith.constant 0 : i32
    %c0_i32_0 = arith.constant 0 : i32
    %c0_i32_1 = arith.constant 0 : i32
    return %c0_i32, %c0_i32_0 : i32, i32
  }
  func.func @transform_3(%arg0: i32, %arg1: i32) -> (i32, i32) {
    %c0_i32 = arith.constant 0 : i32
    %c0_i32_0 = arith.constant 0 : i32
    %c0_i32_1 = arith.constant 0 : i32
    return %c0_i32, %c0_i32_0 : i32, i32
  }
  func.func @transform_4(%arg0: i32, %arg1: i32) -> (i32, i32) {
    %c0_i32 = arith.constant 0 : i32
    %c0_i32_0 = arith.constant 0 : i32
    %c0_i32_1 = arith.constant 0 : i32
    return %c0_i32, %c0_i32_0 : i32, i32
  }
  func.func @transform_5(%arg0: i32, %arg1: i32) -> (i32, i32) {
    %c0_i32 = arith.constant 0 : i32
    %c0_i32_0 = arith.constant 0 : i32
    %c0_i32_1 = arith.constant 0 : i32
    return %c0_i32, %c0_i32_0 : i32, i32
  }
  func.func @transform_6(%arg0: i32, %arg1: i32) -> (i32, i32) {
    %c0_i32 = arith.constant 0 : i32
    %c0_i32_0 = arith.constant 0 : i32
    %c0_i32_1 = arith.constant 0 : i32
    return %c0_i32, %c0_i32_0 : i32, i32
  }
  func.func @transform_7(%arg0: i32, %arg1: i32) -> (i32, i32) {
    %c0_i32 = arith.constant 0 : i32
    %c0_i32_0 = arith.constant 0 : i32
    return %arg0, %c0_i32 : i32, i32
  }
}

</mosaic_0001>

<llo_original>
// kernel: tpu_custom_call.1
$region0: #{tpu_custom_call.1}
  #allocation0 [shape = 'u32[]', space=smem, size = 0x4, offset = 0x4, fixed_abs, tag = 'smem constant byte address 0x4 - core index']
  #allocation1 [shape = 'u32[72,128]{1,0:T(1,128)}', space=vmem, size = 0x9000, scoped, tag = 'internal scratch']
  #allocation2 [shape = 'f32[2,512]{1,0:T(2,128)}', space=vmem, size = 0x1000, scoped, tag = 'scratch operand']
  #allocation3 [shape = 'f32[1,1]{1,0:T(1,128)S(1)}', space=vmem, size = 0x200, scoped, tag = 'scoped memory for tpu_custom_call.1']
  %s0 = inlined_call_operand.hbm [shape: f32[2,1024], index: 0, kind: input, shape index: {}]
  %s1 = inlined_call_operand.hbm [shape: bf16[1024,512], index: 1, kind: input, shape index: {}]
  %s2 = inlined_call_operand.hbm [shape: f32[1,512], index: 2, kind: input, shape index: {}]
  %s3 = inlined_call_operand.hbm [shape: bf16[512,256], index: 3, kind: input, shape index: {}]
  %s4 = inlined_call_operand.vmem [shape: f32[1,256], index: 4, kind: input, shape index: {}]
  %s5 = inlined_call_operand.vmem [shape: f32[1,256], index: 5, kind: input, shape index: {}]
  %s6 = inlined_call_operand.<no memory space> [shape: f32[1,1], index: 6, kind: input, shape index: {}]
  %s7 = inlined_call_operand.vmem [shape: f32[2,1], index: 7, kind: output, shape index: {}]
  %s8 = sld [smem:[#allocation0]]
  $region62: #{tpu_custom_call.1} parent=0
    _
  %s10 = ssub.s32 1, %s8
  %s11 = scalar_select 0, %s10, %s8
  %v12 = vstv %s6
  %13 = vst [vmem:[#allocation3] sm:$0x1] %v12
  $region1: #{tpu_custom_call.1} parent=0
    #allocation4 [shape = 'u8[8192]{0}', space=vmem, size = 0x2000, scoped, tag = 'input window, operand 0, single buffered']
    #allocation5 [shape = 's32[1]{0}', space=sflag, size = 0x4, scoped, tag = 'scoped memory for tpu_custom_call.1']
    #allocation6 [shape = 'u8[1048576]{0}', space=vmem, size = 0x100000, scoped, tag = 'input window, operand 1, single buffered']
    #allocation7 [shape = 's32[1]{0}', space=sflag, size = 0x4, scoped, tag = 'scoped memory for tpu_custom_call.1']
    #allocation8 [shape = 'u8[2048]{0}', space=vmem, size = 0x800, scoped, tag = 'input window, operand 2, single buffered']
    #allocation9 [shape = 'u8[262144]{0}', space=vmem, size = 0x40000, scoped, tag = 'input window, operand 3, single buffered']
    #allocation10 [shape = 's32[1]{0}', space=sflag, size = 0x4, scoped, tag = 'scoped memory for tpu_custom_call.1']
    %14 = vsyncpa [#allocation5], 0
    %15 = vsyncpa [#allocation7], 0
    %16 = vsyncpa [#allocation10], 0
    // Predicated region
    $region2: #{tpu_custom_call.1} parent=1 // pred_check
      _
    $region3: #{tpu_custom_call.1} parent=1 // pred_check_branch
      %18 = sbr.rel (0) target = $region5
    $region4: #{tpu_custom_call.1} parent=1 // pred_region
      %20 = vsyncadd [#allocation5], 0
      %s22 = sshll.u32 %s0, 4
      %s23 = int_to_ptr.hbm [resolvable:$true] %s22
      %s24 = sshll.u32 [#allocation4], 4
      %s25 = int_to_ptr.vmem [resolvable:$true] %s24
      %27 = dma.hbm_to_vmem [thread:$0]  %s23, 256, %s25, [#allocation5]
    $region5: #{tpu_custom_call.1} parent=1 // pred_fallthru
      _
    // Predicated region
    $region6: #{tpu_custom_call.1} parent=1 // pred_check
      _
    $region7: #{tpu_custom_call.1} parent=1 // pred_check_branch
      %29 = sbr.rel (0) target = $region9
    $region8: #{tpu_custom_call.1} parent=1 // pred_region
      %31 = vsyncadd [#allocation7], 0
      %s32 = sshll.u32 %s1, 4
      %s33 = int_to_ptr.hbm [resolvable:$true] %s32
      %s34 = sshll.u32 [#allocation6], 4
      %s35 = int_to_ptr.vmem [resolvable:$true] %s34
      %40 = dma.hbm_to_vmem [thread:$0]  %s33, 32768, %s35, [#allocation7], 256, 256, 16
    $region9: #{tpu_custom_call.1} parent=1 // pred_fallthru
      _
    // Predicated region
    $region10: #{tpu_custom_call.1} parent=1 // pred_check
      _
    $region11: #{tpu_custom_call.1} parent=1 // pred_check_branch
      %42 = sbr.rel (0) target = $region13
    $region12: #{tpu_custom_call.1} parent=1 // pred_region
      %44 = vsyncadd [#allocation7], 0
      %s46 = sshll.u32 %s2, 4
      %s47 = int_to_ptr.hbm [resolvable:$true] %s46
      %s48 = sshll.u32 [#allocation8], 4
      %s49 = int_to_ptr.vmem [resolvable:$true] %s48
      %51 = dma.hbm_to_vmem [thread:$0]  %s47, 64, %s49, [#allocation7]
    $region13: #{tpu_custom_call.1} parent=1 // pred_fallthru
      _
    // Predicated region
    $region14: #{tpu_custom_call.1} parent=1 // pred_check
      _
    $region15: #{tpu_custom_call.1} parent=1 // pred_check_branch
      %53 = sbr.rel (0) target = $region17
    $region16: #{tpu_custom_call.1} parent=1 // pred_region
      %55 = vsyncadd [#allocation10], 0
      %s56 = sshll.u32 %s3, 4
      %s57 = int_to_ptr.hbm [resolvable:$true] %s56
      %s58 = sshll.u32 [#allocation9], 4
      %s59 = int_to_ptr.vmem [resolvable:$true] %s58
      %64 = dma.hbm_to_vmem [thread:$0]  %s57, 8192, %s59, [#allocation10], 128, 128, 8
    $region17: #{tpu_custom_call.1} parent=1 // pred_fallthru
      _
    // Predicated region
    $region18: #{tpu_custom_call.1} parent=1 // pred_check
      _
    $region19: #{tpu_custom_call.1} parent=1 // pred_check_branch
      %66 = sbr.rel (0) target = $region21
    $region20: #{tpu_custom_call.1} parent=1 // pred_region
      _
    $region21: #{tpu_custom_call.1} parent=1 // pred_fallthru
      _
    // Predicated region
    $region22: #{tpu_custom_call.1} parent=1 // pred_check
      _
    $region23: #{tpu_custom_call.1} parent=1 // pred_check_branch
      %68 = sbr.rel (0) target = $region25
    $region24: #{tpu_custom_call.1} parent=1 // pred_region
      _
    $region25: #{tpu_custom_call.1} parent=1 // pred_fallthru
      _
    // Predicated region
    $region26: #{tpu_custom_call.1} parent=1 // pred_check
      _
    $region27: #{tpu_custom_call.1} parent=1 // pred_check_branch
      %70 = sbr.rel (0) target = $region29
    $region28: #{tpu_custom_call.1} parent=1 // pred_region
      _
    $region29: #{tpu_custom_call.1} parent=1 // pred_fallthru
      _
    // Predicated region
    $region30: #{tpu_custom_call.1} parent=1 // pred_check
      _
    $region31: #{tpu_custom_call.1} parent=1 // pred_check_branch
      %72 = sbr.rel (0) target = $region33
    $region32: #{tpu_custom_call.1} parent=1 // pred_region
      %74 = dma.done [#allocation5], 256
    $region33: #{tpu_custom_call.1} parent=1 // pred_fallthru
      _
    // Predicated region
    $region34: #{tpu_custom_call.1} parent=1 // pred_check
      _
    $region35: #{tpu_custom_call.1} parent=1 // pred_check_branch
      %76 = sbr.rel (0) target = $region37
    $region36: #{tpu_custom_call.1} parent=1 // pred_region
      %78 = dma.done [#allocation7], 32768
    $region37: #{tpu_custom_call.1} parent=1 // pred_fallthru
      _
    // Predicated region
    $region38: #{tpu_custom_call.1} parent=1 // pred_check
      _
    $region39: #{tpu_custom_call.1} parent=1 // pred_check_branch
      %80 = sbr.rel (0) target = $region41
    $region40: #{tpu_custom_call.1} parent=1 // pred_region
      %82 = dma.done [#allocation7], 64
    $region41: #{tpu_custom_call.1} parent=1 // pred_fallthru
      _
    // Predicated region
    $region42: #{tpu_custom_call.1} parent=1 // pred_check
      _
    $region43: #{tpu_custom_call.1} parent=1 // pred_check_branch
      %84 = sbr.rel (0) target = $region45
    $region44: #{tpu_custom_call.1} parent=1 // pred_region
      %86 = dma.done [#allocation10], 8192
    $region45: #{tpu_custom_call.1} parent=1 // pred_fallthru
      _
    %p87 = scmp.eq.s32.totalorder 0, 0
    // Predicated region
    $region46: #{tpu_custom_call.1} parent=1 // pred_check
      %p88 = pneg %p87
    $region47: #{tpu_custom_call.1} parent=1 // pred_check_branch
      %90 = sbr.rel (%p88) target = $region49
    $region48: #{tpu_custom_call.1} parent=1 // pred_region
      %91 = vst [vmem:[#allocation2] sm:$0xff] 0.0
    $region49: #{tpu_custom_call.1} parent=1 // pred_fallthru
      _
    %v92 = vld [vmem:[#allocation4] sm:$0xff]
    %v93 = vld [vmem:[#allocation4 + $0x8] sm:$0xff]
    %96 = vst [vmem:[#allocation1] ss:$4 sm:$0xff] %v92
    %s97 = scalar_lea.vmem [#allocation1], 32
    %98 = vst [vmem:[%s97] ss:$4 sm:$0xff] %v93
    %v99 = vld.sshfl [vmem:[#allocation1] sm:$0xff pattern:$0x73625140]
    %v100 = vld.sshfl [vmem:[#allocation1 + $0x8] sm:$0xff pattern:$0x73625140]
    %v101 = vld.sshfl [vmem:[#allocation1 + $0x10] sm:$0xff pattern:$0x73625140]
    %v102 = vld.sshfl [vmem:[#allocation1 + $0x18] sm:$0xff pattern:$0x73625140]
    %v103 = vld.sshfl [vmem:[#allocation1 + $0x20] sm:$0xff pattern:$0x73625140]
    %v104 = vld.sshfl [vmem:[#allocation1 + $0x28] sm:$0xff pattern:$0x73625140]
    %v105 = vld.sshfl [vmem:[#allocation1 + $0x30] sm:$0xff pattern:$0x73625140]
    %v106 = vld.sshfl [vmem:[#allocation1 + $0x38] sm:$0xff pattern:$0x73625140]
    %v115 = vpack.c.bf16 %v99, %v99
    %v116 = vpack.c.bf16 %v100, %v100
    %v117 = vpack.c.bf16 %v101, %v101
    %v118 = vpack.c.bf16 %v102, %v102
    %v119 = vpack.c.bf16 %v103, %v103
    %v120 = vpack.c.bf16 %v104, %v104
    %v121 = vpack.c.bf16 %v105, %v105
    %v122 = vpack.c.bf16 %v106, %v106
    %v123 = vld [vmem:[#allocation2] sm:$0xff]
    %v124 = vld [vmem:[#allocation6] sm:$0xff]
    %v125 = vld [vmem:[#allocation6 + $0x8] sm:$0xff]
    %v126 = vld [vmem:[#allocation6 + $0x10] sm:$0xff]
    %v127 = vld [vmem:[#allocation6 + $0x18] sm:$0xff]
    %v128 = vld [vmem:[#allocation6 + $0x20] sm:$0xff]
    %v129 = vld [vmem:[#allocation6 + $0x28] sm:$0xff]
    %v130 = vld [vmem:[#allocation6 + $0x30] sm:$0xff]
    %v131 = vld [vmem:[#allocation6 + $0x38] sm:$0xff]
    %v132 = vld [vmem:[#allocation6 + $0x40] sm:$0xff]
    %v133 = vld [vmem:[#allocation6 + $0x48] sm:$0xff]
    %v134 = vld [vmem:[#allocation6 + $0x50] sm:$0xff]
    %v135 = vld [vmem:[#allocation6 + $0x58] sm:$0xff]
    %v136 = vld [vmem:[#allocation6 + $0x60] sm:$0xff]
    %v137 = vld [vmem:[#allocation6 + $0x68] sm:$0xff]
    %v138 = vld [vmem:[#allocation6 + $0x70] sm:$0xff]
    %v139 = vld [vmem:[#allocation6 + $0x78] sm:$0xff]
    %v140 = vld [vmem:[#allocation6 + $0x80] sm:$0xff]
    %v141 = vld [vmem:[#allocation6 + $0x88] sm:$0xff]
    %v142 = vld [vmem:[#allocation6 + $0x90] sm:$0xff]
    %v143 = vld [vmem:[#allocation6 + $0x98] sm:$0xff]
    %v144 = vld [vmem:[#allocation6 + $0xa0] sm:$0xff]
    %v145 = vld [vmem:[#allocation6 + $0xa8] sm:$0xff]
    %v146 = vld [vmem:[#allocation6 + $0xb0] sm:$0xff]
    %v147 = vld [vmem:[#allocation6 + $0xb8] sm:$0xff]
    %v148 = vld [vmem:[#allocation6 + $0xc0] sm:$0xff]
    %v149 = vld [vmem:[#allocation6 + $0xc8] sm:$0xff]
    %v150 = vld [vmem:[#allocation6 + $0xd0] sm:$0xff]
    %v151 = vld [vmem:[#allocation6 + $0xd8] sm:$0xff]
    %v152 = vld [vmem:[#allocation6 + $0xe0] sm:$0xff]
    %v153 = vld [vmem:[#allocation6 + $0xe8] sm:$0xff]
    %v154 = vld [vmem:[#allocation6 + $0xf0] sm:$0xff]
    %v155 = vld [vmem:[#allocation6 + $0xf8] sm:$0xff]
    %v156 = vld [vmem:[#allocation6 + $0x100] sm:$0xff]
    %v157 = vld [vmem:[#allocation6 + $0x108] sm:$0xff]
    %v158 = vld [vmem:[#allocation6 + $0x110] sm:$0xff]
    %v159 = vld [vmem:[#allocation6 + $0x118] sm:$0xff]
    %v160 = vld [vmem:[#allocation6 + $0x120] sm:$0xff]
    %v161 = vld [vmem:[#allocation6 + $0x128] sm:$0xff]
    %v162 = vld [vmem:[#allocation6 + $0x130] sm:$0xff]
    %v163 = vld [vmem:[#allocation6 + $0x138] sm:$0xff]
    %v164 = vld [vmem:[#allocation6 + $0x140] sm:$0xff]
    %v165 = vld [vmem:[#allocation6 + $0x148] sm:$0xff]
    %v166 = vld [vmem:[#allocation6 + $0x150] sm:$0xff]
    %v167 = vld [vmem:[#allocation6 + $0x158] sm:$0xff]
    %v168 = vld [vmem:[#allocation6 + $0x160] sm:$0xff]
    %v169 = vld [vmem:[#allocation6 + $0x168] sm:$0xff]
    %v170 = vld [vmem:[#allocation6 + $0x170] sm:$0xff]
    %v171 = vld [vmem:[#allocation6 + $0x178] sm:$0xff]
    %v172 = vld [vmem:[#allocation6 + $0x180] sm:$0xff]
    %v173 = vld [vmem:[#allocation6 + $0x188] sm:$0xff]
    %v174 = vld [vmem:[#allocation6 + $0x190] sm:$0xff]
    %v175 = vld [vmem:[#allocation6 + $0x198] sm:$0xff]
    %v176 = vld [vmem:[#allocation6 + $0x1a0] sm:$0xff]
    %v177 = vld [vmem:[#allocation6 + $0x1a8] sm:$0xff]
    %v178 = vld [vmem:[#allocation6 + $0x1b0] sm:$0xff]
    %v179 = vld [vmem:[#allocation6 + $0x1b8] sm:$0xff]
    %v180 = vld [vmem:[#allocation6 + $0x1c0] sm:$0xff]
    %v181 = vld [vmem:[#allocation6 + $0x1c8] sm:$0xff]
    %v182 = vld [vmem:[#allocation6 + $0x1d0] sm:$0xff]
    %v183 = vld [vmem:[#allocation6 + $0x1d8] sm:$0xff]
    %v184 = vld [vmem:[#allocation6 + $0x1e0] sm:$0xff]
    %v185 = vld [vmem:[#allocation6 + $0x1e8] sm:$0xff]
    %v186 = vld [vmem:[#allocation6 + $0x1f0] sm:$0xff]
    %v187 = vld [vmem:[#allocation6 + $0x1f8] sm:$0xff]
    %v188 = vld [vmem:[#allocation6 + $0x200] sm:$0xff]
    %v189 = vld [vmem:[#allocation6 + $0x208] sm:$0xff]
    %v190 = vld [vmem:[#allocation6 + $0x210] sm:$0xff]
    %v191 = vld [vmem:[#allocation6 + $0x218] sm:$0xff]
    %v192 = vld [vmem:[#allocation6 + $0x220] sm:$0xff]
    %v193 = vld [vmem:[#allocation6 + $0x228] sm:$0xff]
    %v194 = vld [vmem:[#allocation6 + $0x230] sm:$0xff]
    %v195 = vld [vmem:[#allocation6 + $0x238] sm:$0xff]
    %v196 = vld [vmem:[#allocation6 + $0x240] sm:$0xff]
    %v197 = vld [vmem:[#allocation6 + $0x248] sm:$0xff]
    %v198 = vld [vmem:[#allocation6 + $0x250] sm:$0xff]
    %v199 = vld [vmem:[#allocation6 + $0x258] sm:$0xff]
    %v200 = vld [vmem:[#allocation6 + $0x260] sm:$0xff]
    %v201 = vld [vmem:[#allocation6 + $0x268] sm:$0xff]
    %v202 = vld [vmem:[#allocation6 + $0x270] sm:$0xff]
    %v203 = vld [vmem:[#allocation6 + $0x278] sm:$0xff]
    %v204 = vld [vmem:[#allocation6 + $0x280] sm:$0xff]
    %v205 = vld [vmem:[#allocation6 + $0x288] sm:$0xff]
    %v206 = vld [vmem:[#allocation6 + $0x290] sm:$0xff]
    %v207 = vld [vmem:[#allocation6 + $0x298] sm:$0xff]
    %v208 = vld [vmem:[#allocation6 + $0x2a0] sm:$0xff]
    %v209 = vld [vmem:[#allocation6 + $0x2a8] sm:$0xff]
    %v210 = vld [vmem:[#allocation6 + $0x2b0] sm:$0xff]
    %v211 = vld [vmem:[#allocation6 + $0x2b8] sm:$0xff]
    %v212 = vld [vmem:[#allocation6 + $0x2c0] sm:$0xff]
    %v213 = vld [vmem:[#allocation6 + $0x2c8] sm:$0xff]
    %v214 = vld [vmem:[#allocation6 + $0x2d0] sm:$0xff]
    %v215 = vld [vmem:[#allocation6 + $0x2d8] sm:$0xff]
    %v216 = vld [vmem:[#allocation6 + $0x2e0] sm:$0xff]
    %v217 = vld [vmem:[#allocation6 + $0x2e8] sm:$0xff]
    %v218 = vld [vmem:[#allocation6 + $0x2f0] sm:$0xff]
    %v219 = vld [vmem:[#allocation6 + $0x2f8] sm:$0xff]
    %v220 = vld [vmem:[#allocation6 + $0x300] sm:$0xff]
    %v221 = vld [vmem:[#allocation6 + $0x308] sm:$0xff]
    %v222 = vld [vmem:[#allocation6 + $0x310] sm:$0xff]
    %v223 = vld [vmem:[#allocation6 + $0x318] sm:$0xff]
    %v224 = vld [vmem:[#allocation6 + $0x320] sm:$0xff]
    %v225 = vld [vmem:[#allocation6 + $0x328] sm:$0xff]
    %v226 = vld [vmem:[#allocation6 + $0x330] sm:$0xff]
    %v227 = vld [vmem:[#allocation6 + $0x338] sm:$0xff]
    %v228 = vld [vmem:[#allocation6 + $0x340] sm:$0xff]
    %v229 = vld [vmem:[#allocation6 + $0x348] sm:$0xff]
    %v230 = vld [vmem:[#allocation6 + $0x350] sm:$0xff]
    %v231 = vld [vmem:[#allocation6 + $0x358] sm:$0xff]
    %v232 = vld [vmem:[#allocation6 + $0x360] sm:$0xff]
    %v233 = vld [vmem:[#allocation6 + $0x368] sm:$0xff]
    %v234 = vld [vmem:[#allocation6 + $0x370] sm:$0xff]
    %v235 = vld [vmem:[#allocation6 + $0x378] sm:$0xff]
    %v236 = vld [vmem:[#allocation6 + $0x380] sm:$0xff]
    %v237 = vld [vmem:[#allocation6 + $0x388] sm:$0xff]
    %v238 = vld [vmem:[#allocation6 + $0x390] sm:$0xff]
    %v239 = vld [vmem:[#allocation6 + $0x398] sm:$0xff]
    %v240 = vld [vmem:[#allocation6 + $0x3a0] sm:$0xff]
    %v241 = vld [vmem:[#allocation6 + $0x3a8] sm:$0xff]
    %v242 = vld [vmem:[#allocation6 + $0x3b0] sm:$0xff]
    %v243 = vld [vmem:[#allocation6 + $0x3b8] sm:$0xff]
    %v244 = vld [vmem:[#allocation6 + $0x3c0] sm:$0xff]
    %v245 = vld [vmem:[#allocation6 + $0x3c8] sm:$0xff]
    %v246 = vld [vmem:[#allocation6 + $0x3d0] sm:$0xff]
    %v247 = vld [vmem:[#allocation6 + $0x3d8] sm:$0xff]
    %v248 = vld [vmem:[#allocation6 + $0x3e0] sm:$0xff]
    %v249 = vld [vmem:[#allocation6 + $0x3e8] sm:$0xff]
    %v250 = vld [vmem:[#allocation6 + $0x3f0] sm:$0xff]
    %v251 = vld [vmem:[#allocation6 + $0x3f8] sm:$0xff]
    %v252 = vld [vmem:[#allocation6 + $0x400] sm:$0xff]
    %v253 = vld [vmem:[#allocation6 + $0x408] sm:$0xff]
    %v254 = vld [vmem:[#allocation6 + $0x410] sm:$0xff]
    %v255 = vld [vmem:[#allocation6 + $0x418] sm:$0xff]
    %v256 = vld [vmem:[#allocation6 + $0x420] sm:$0xff]
    %v257 = vld [vmem:[#allocation6 + $0x428] sm:$0xff]
    %v258 = vld [vmem:[#allocation6 + $0x430] sm:$0xff]
    %v259 = vld [vmem:[#allocation6 + $0x438] sm:$0xff]
    %v260 = vld [vmem:[#allocation6 + $0x440] sm:$0xff]
    %v261 = vld [vmem:[#allocation6 + $0x448] sm:$0xff]
    %v262 = vld [vmem:[#allocation6 + $0x450] sm:$0xff]
    %v263 = vld [vmem:[#allocation6 + $0x458] sm:$0xff]
    %v264 = vld [vmem:[#allocation6 + $0x460] sm:$0xff]
    %v265 = vld [vmem:[#allocation6 + $0x468] sm:$0xff]
    %v266 = vld [vmem:[#allocation6 + $0x470] sm:$0xff]
    %v267 = vld [vmem:[#allocation6 + $0x478] sm:$0xff]
    %v268 = vld [vmem:[#allocation6 + $0x480] sm:$0xff]
    %v269 = vld [vmem:[#allocation6 + $0x488] sm:$0xff]
    %v270 = vld [vmem:[#allocation6 + $0x490] sm:$0xff]
    %v271 = vld [vmem:[#allocation6 + $0x498] sm:$0xff]
    %v272 = vld [vmem:[#allocation6 + $0x4a0] sm:$0xff]
    %v273 = vld [vmem:[#allocation6 + $0x4a8] sm:$0xff]
    %v274 = vld [vmem:[#allocation6 + $0x4b0] sm:$0xff]
    %v275 = vld [vmem:[#allocation6 + $0x4b8] sm:$0xff]
    %v276 = vld [vmem:[#allocation6 + $0x4c0] sm:$0xff]
    %v277 = vld [vmem:[#allocation6 + $0x4c8] sm:$0xff]
    %v278 = vld [vmem:[#allocation6 + $0x4d0] sm:$0xff]
    %v279 = vld [vmem:[#allocation6 + $0x4d8] sm:$0xff]
    %v280 = vld [vmem:[#allocation6 + $0x4e0] sm:$0xff]
    %v281 = vld [vmem:[#allocation6 + $0x4e8] sm:$0xff]
    %v282 = vld [vmem:[#allocation6 + $0x4f0] sm:$0xff]
    %v283 = vld [vmem:[#allocation6 + $0x4f8] sm:$0xff]
    %v284 = vld [vmem:[#allocation6 + $0x500] sm:$0xff]
    %v285 = vld [vmem:[#allocation6 + $0x508] sm:$0xff]
    %v286 = vld [vmem:[#allocation6 + $0x510] sm:$0xff]
    %v287 = vld [vmem:[#allocation6 + $0x518] sm:$0xff]
    %v288 = vld [vmem:[#allocation6 + $0x520] sm:$0xff]
    %v289 = vld [vmem:[#allocation6 + $0x528] sm:$0xff]
    %v290 = vld [vmem:[#allocation6 + $0x530] sm:$0xff]
    %v291 = vld [vmem:[#allocation6 + $0x538] sm:$0xff]
    %v292 = vld [vmem:[#allocation6 + $0x540] sm:$0xff]
    %v293 = vld [vmem:[#allocation6 + $0x548] sm:$0xff]
    %v294 = vld [vmem:[#allocation6 + $0x550] sm:$0xff]
    %v295 = vld [vmem:[#allocation6 + $0x558] sm:$0xff]
    %v296 = vld [vmem:[#allocation6 + $0x560] sm:$0xff]
    %v297 = vld [vmem:[#allocation6 + $0x568] sm:$0xff]
    %v298 = vld [vmem:[#allocation6 + $0x570] sm:$0xff]
    %v299 = vld [vmem:[#allocation6 + $0x578] sm:$0xff]
    %v300 = vld [vmem:[#allocation6 + $0x580] sm:$0xff]
    %v301 = vld [vmem:[#allocation6 + $0x588] sm:$0xff]
    %v302 = vld [vmem:[#allocation6 + $0x590] sm:$0xff]
    %v303 = vld [vmem:[#allocation6 + $0x598] sm:$0xff]
    %v304 = vld [vmem:[#allocation6 + $0x5a0] sm:$0xff]
    %v305 = vld [vmem:[#allocation6 + $0x5a8] sm:$0xff]
    %v306 = vld [vmem:[#allocation6 + $0x5b0] sm:$0xff]
    %v307 = vld [vmem:[#allocation6 + $0x5b8] sm:$0xff]
    %v308 = vld [vmem:[#allocation6 + $0x5c0] sm:$0xff]
    %v309 = vld [vmem:[#allocation6 + $0x5c8] sm:$0xff]
    %v310 = vld [vmem:[#allocation6 + $0x5d0] sm:$0xff]
    %v311 = vld [vmem:[#allocation6 + $0x5d8] sm:$0xff]
    %v312 = vld [vmem:[#allocation6 + $0x5e0] sm:$0xff]
    %v313 = vld [vmem:[#allocation6 + $0x5e8] sm:$0xff]
    %v314 = vld [vmem:[#allocation6 + $0x5f0] sm:$0xff]
    %v315 = vld [vmem:[#allocation6 + $0x5f8] sm:$0xff]
    %v316 = vld [vmem:[#allocation6 + $0x600] sm:$0xff]
    %v317 = vld [vmem:[#allocation6 + $0x608] sm:$0xff]
    %v318 = vld [vmem:[#allocation6 + $0x610] sm:$0xff]
    %v319 = vld [vmem:[#allocation6 + $0x618] sm:$0xff]
    %v320 = vld [vmem:[#allocation6 + $0x620] sm:$0xff]
    %v321 = vld [vmem:[#allocation6 + $0x628] sm:$0xff]
    %v322 = vld [vmem:[#allocation6 + $0x630] sm:$0xff]
    %v323 = vld [vmem:[#allocation6 + $0x638] sm:$0xff]
    %v324 = vld [vmem:[#allocation6 + $0x640] sm:$0xff]
    %v325 = vld [vmem:[#allocation6 + $0x648] sm:$0xff]
    %v326 = vld [vmem:[#allocation6 + $0x650] sm:$0xff]
    %v327 = vld [vmem:[#allocation6 + $0x658] sm:$0xff]
    %v328 = vld [vmem:[#allocation6 + $0x660] sm:$0xff]
    %v329 = vld [vmem:[#allocation6 + $0x668] sm:$0xff]
    %v330 = vld [vmem:[#allocation6 + $0x670] sm:$0xff]
    %v331 = vld [vmem:[#allocation6 + $0x678] sm:$0xff]
    %v332 = vld [vmem:[#allocation6 + $0x680] sm:$0xff]
    %v333 = vld [vmem:[#allocation6 + $0x688] sm:$0xff]
    %v334 = vld [vmem:[#allocation6 + $0x690] sm:$0xff]
    %v335 = vld [vmem:[#allocation6 + $0x698] sm:$0xff]
    %v336 = vld [vmem:[#allocation6 + $0x6a0] sm:$0xff]
    %v337 = vld [vmem:[#allocation6 + $0x6a8] sm:$0xff]
    %v338 = vld [vmem:[#allocation6 + $0x6b0] sm:$0xff]
    %v339 = vld [vmem:[#allocation6 + $0x6b8] sm:$0xff]
    %v340 = vld [vmem:[#allocation6 + $0x6c0] sm:$0xff]
    %v341 = vld [vmem:[#allocation6 + $0x6c8] sm:$0xff]
    %v342 = vld [vmem:[#allocation6 + $0x6d0] sm:$0xff]
    %v343 = vld [vmem:[#allocation6 + $0x6d8] sm:$0xff]
    %v344 = vld [vmem:[#allocation6 + $0x6e0] sm:$0xff]
    %v345 = vld [vmem:[#allocation6 + $0x6e8] sm:$0xff]
    %v346 = vld [vmem:[#allocation6 + $0x6f0] sm:$0xff]
    %v347 = vld [vmem:[#allocation6 + $0x6f8] sm:$0xff]
    %v348 = vld [vmem:[#allocation6 + $0x700] sm:$0xff]
    %v349 = vld [vmem:[#allocation6 + $0x708] sm:$0xff]
    %v350 = vld [vmem:[#allocation6 + $0x710] sm:$0xff]
    %v351 = vld [vmem:[#allocation6 + $0x718] sm:$0xff]
    %v352 = vld [vmem:[#allocation6 + $0x720] sm:$0xff]
    %v353 = vld [vmem:[#allocation6 + $0x728] sm:$0xff]
    %v354 = vld [vmem:[#allocation6 + $0x730] sm:$0xff]
    %v355 = vld [vmem:[#allocation6 + $0x738] sm:$0xff]
    %v356 = vld [vmem:[#allocation6 + $0x740] sm:$0xff]
    %v357 = vld [vmem:[#allocation6 + $0x748] sm:$0xff]
    %v358 = vld [vmem:[#allocation6 + $0x750] sm:$0xff]
    %v359 = vld [vmem:[#allocation6 + $0x758] sm:$0xff]
    %v360 = vld [vmem:[#allocation6 + $0x760] sm:$0xff]
    %v361 = vld [vmem:[#allocation6 + $0x768] sm:$0xff]
    %v362 = vld [vmem:[#allocation6 + $0x770] sm:$0xff]
    %v363 = vld [vmem:[#allocation6 + $0x778] sm:$0xff]
    %v364 = vld [vmem:[#allocation6 + $0x780] sm:$0xff]
    %v365 = vld [vmem:[#allocation6 + $0x788] sm:$0xff]
    %v366 = vld [vmem:[#allocation6 + $0x790] sm:$0xff]
    %v367 = vld [vmem:[#allocation6 + $0x798] sm:$0xff]
    %v368 = vld [vmem:[#allocation6 + $0x7a0] sm:$0xff]
    %v369 = vld [vmem:[#allocation6 + $0x7a8] sm:$0xff]
    %v370 = vld [vmem:[#allocation6 + $0x7b0] sm:$0xff]
    %v371 = vld [vmem:[#allocation6 + $0x7b8] sm:$0xff]
    %v372 = vld [vmem:[#allocation6 + $0x7c0] sm:$0xff]
    %v373 = vld [vmem:[#allocation6 + $0x7c8] sm:$0xff]
    %v374 = vld [vmem:[#allocation6 + $0x7d0] sm:$0xff]
    %v375 = vld [vmem:[#allocation6 + $0x7d8] sm:$0xff]
    %v376 = vld [vmem:[#allocation6 + $0x7e0] sm:$0xff]
    %v377 = vld [vmem:[#allocation6 + $0x7e8] sm:$0xff]
    %v378 = vld [vmem:[#allocation6 + $0x7f0] sm:$0xff]
    %v379 = vld [vmem:[#allocation6 + $0x7f8] sm:$0xff]
    %v636 = vunpack.c.l.b16 %v124
    %v637 = vunpack.c.h.b16 %v124
    %v638 = vunpack.c.l.b16 %v125
    %v639 = vunpack.c.h.b16 %v125
    %v640 = vunpack.c.l.b16 %v126
    %v641 = vunpack.c.h.b16 %v126
    %v642 = vunpack.c.l.b16 %v127
    %v643 = vunpack.c.h.b16 %v127
    %v644 = vunpack.c.l.b16 %v128
    %v645 = vunpack.c.h.b16 %v128
    %v646 = vunpack.c.l.b16 %v129
    %v647 = vunpack.c.h.b16 %v129
    %v648 = vunpack.c.l.b16 %v130
    %v649 = vunpack.c.h.b16 %v130
    %v650 = vunpack.c.l.b16 %v131
    %v651 = vunpack.c.h.b16 %v131
    %v652 = vunpack.c.l.b16 %v132
    %v653 = vunpack.c.h.b16 %v132
    %v654 = vunpack.c.l.b16 %v133
    %v655 = vunpack.c.h.b16 %v133
    %v656 = vunpack.c.l.b16 %v134
    %v657 = vunpack.c.h.b16 %v134
    %v658 = vunpack.c.l.b16 %v135
    %v659 = vunpack.c.h.b16 %v135
    %v660 = vunpack.c.l.b16 %v136
    %v661 = vunpack.c.h.b16 %v136
    %v662 = vunpack.c.l.b16 %v137
    %v663 = vunpack.c.h.b16 %v137
    %v664 = vunpack.c.l.b16 %v138
    %v665 = vunpack.c.h.b16 %v138
    %v666 = vunpack.c.l.b16 %v139
    %v667 = vunpack.c.h.b16 %v139
    %v668 = vunpack.c.l.b16 %v140
    %v669 = vunpack.c.h.b16 %v140
    %v670 = vunpack.c.l.b16 %v141
    %v671 = vunpack.c.h.b16 %v141
    %v672 = vunpack.c.l.b16 %v142
    %v673 = vunpack.c.h.b16 %v142
    %v674 = vunpack.c.l.b16 %v143
    %v675 = vunpack.c.h.b16 %v143
    %v676 = vunpack.c.l.b16 %v144
    %v677 = vunpack.c.h.b16 %v144
    %v678 = vunpack.c.l.b16 %v145
    %v679 = vunpack.c.h.b16 %v145
    %v680 = vunpack.c.l.b16 %v146
    %v681 = vunpack.c.h.b16 %v146
    %v682 = vunpack.c.l.b16 %v147
    %v683 = vunpack.c.h.b16 %v147
    %v684 = vunpack.c.l.b16 %v148
    %v685 = vunpack.c.h.b16 %v148
    %v686 = vunpack.c.l.b16 %v149
    %v687 = vunpack.c.h.b16 %v149
    %v688 = vunpack.c.l.b16 %v150
    %v689 = vunpack.c.h.b16 %v150
    %v690 = vunpack.c.l.b16 %v151
    %v691 = vunpack.c.h.b16 %v151
    %v692 = vunpack.c.l.b16 %v152
    %v693 = vunpack.c.h.b16 %v152
    %v694 = vunpack.c.l.b16 %v153
    %v695 = vunpack.c.h.b16 %v153
    %v696 = vunpack.c.l.b16 %v154
    %v697 = vunpack.c.h.b16 %v154
    %v698 = vunpack.c.l.b16 %v155
    %v699 = vunpack.c.h.b16 %v155
    %v700 = vunpack.c.l.b16 %v156
    %v701 = vunpack.c.h.b16 %v156
    %v702 = vunpack.c.l.b16 %v157
    %v703 = vunpack.c.h.b16 %v157
    %v704 = vunpack.c.l.b16 %v158
    %v705 = vunpack.c.h.b16 %v158
    %v706 = vunpack.c.l.b16 %v159
    %v707 = vunpack.c.h.b16 %v159
    %v708 = vunpack.c.l.b16 %v160
    %v709 = vunpack.c.h.b16 %v160
    %v710 = vunpack.c.l.b16 %v161
    %v711 = vunpack.c.h.b16 %v161
    %v712 = vunpack.c.l.b16 %v162
    %v713 = vunpack.c.h.b16 %v162
    %v714 = vunpack.c.l.b16 %v163
    %v715 = vunpack.c.h.b16 %v163
    %v716 = vunpack.c.l.b16 %v164
    %v717 = vunpack.c.h.b16 %v164
    %v718 = vunpack.c.l.b16 %v165
    %v719 = vunpack.c.h.b16 %v165
    %v720 = vunpack.c.l.b16 %v166
    %v721 = vunpack.c.h.b16 %v166
    %v722 = vunpack.c.l.b16 %v167
    %v723 = vunpack.c.h.b16 %v167
    %v724 = vunpack.c.l.b16 %v168
    %v725 = vunpack.c.h.b16 %v168
    %v726 = vunpack.c.l.b16 %v169
    %v727 = vunpack.c.h.b16 %v169
    %v728 = vunpack.c.l.b16 %v170
    %v729 = vunpack.c.h.b16 %v170
    %v730 = vunpack.c.l.b16 %v171
    %v731 = vunpack.c.h.b16 %v171
    %v732 = vunpack.c.l.b16 %v172
    %v733 = vunpack.c.h.b16 %v172
    %v734 = vunpack.c.l.b16 %v173
    %v735 = vunpack.c.h.b16 %v173
    %v736 = vunpack.c.l.b16 %v174
    %v737 = vunpack.c.h.b16 %v174
    %v738 = vunpack.c.l.b16 %v175
    %v739 = vunpack.c.h.b16 %v175
    %v740 = vunpack.c.l.b16 %v176
    %v741 = vunpack.c.h.b16 %v176
    %v742 = vunpack.c.l.b16 %v177
    %v743 = vunpack.c.h.b16 %v177
    %v744 = vunpack.c.l.b16 %v178
    %v745 = vunpack.c.h.b16 %v178
    %v746 = vunpack.c.l.b16 %v179
    %v747 = vunpack.c.h.b16 %v179
    %v748 = vunpack.c.l.b16 %v180
    %v749 = vunpack.c.h.b16 %v180
    %v750 = vunpack.c.l.b16 %v181
    %v751 = vunpack.c.h.b16 %v181
    %v752 = vunpack.c.l.b16 %v182
    %v753 = vunpack.c.h.b16 %v182
    %v754 = vunpack.c.l.b16 %v183
    %v755 = vunpack.c.h.b16 %v183
    %v756 = vunpack.c.l.b16 %v184
    %v757 = vunpack.c.h.b16 %v184
    %v758 = vunpack.c.l.b16 %v185
    %v759 = vunpack.c.h.b16 %v185
    %v760 = vunpack.c.l.b16 %v186
    %v761 = vunpack.c.h.b16 %v186
    %v762 = vunpack.c.l.b16 %v187
    %v763 = vunpack.c.h.b16 %v187
    %v764 = vunpack.c.l.b16 %v188
    %v765 = vunpack.c.h.b16 %v188
    %v766 = vunpack.c.l.b16 %v189
    %v767 = vunpack.c.h.b16 %v189
    %v768 = vunpack.c.l.b16 %v190
    %v769 = vunpack.c.h.b16 %v190
    %v770 = vunpack.c.l.b16 %v191
    %v771 = vunpack.c.h.b16 %v191
    %v772 = vunpack.c.l.b16 %v192
    %v773 = vunpack.c.h.b16 %v192
    %v774 = vunpack.c.l.b16 %v193
    %v775 = vunpack.c.h.b16 %v193
    %v776 = vunpack.c.l.b16 %v194
    %v777 = vunpack.c.h.b16 %v194
    %v778 = vunpack.c.l.b16 %v195
    %v779 = vunpack.c.h.b16 %v195
    %v780 = vunpack.c.l.b16 %v196
    %v781 = vunpack.c.h.b16 %v196
    %v782 = vunpack.c.l.b16 %v197
    %v783 = vunpack.c.h.b16 %v197
    %v784 = vunpack.c.l.b16 %v198
    %v785 = vunpack.c.h.b16 %v198
    %v786 = vunpack.c.l.b16 %v199
    %v787 = vunpack.c.h.b16 %v199
    %v788 = vunpack.c.l.b16 %v200
    %v789 = vunpack.c.h.b16 %v200
    %v790 = vunpack.c.l.b16 %v201
    %v791 = vunpack.c.h.b16 %v201
    %v792 = vunpack.c.l.b16 %v202
    %v793 = vunpack.c.h.b16 %v202
    %v794 = vunpack.c.l.b16 %v203
    %v795 = vunpack.c.h.b16 %v203
    %v796 = vunpack.c.l.b16 %v204
    %v797 = vunpack.c.h.b16 %v204
    %v798 = vunpack.c.l.b16 %v205
    %v799 = vunpack.c.h.b16 %v205
    %v800 = vunpack.c.l.b16 %v206
    %v801 = vunpack.c.h.b16 %v206
    %v802 = vunpack.c.l.b16 %v207
    %v803 = vunpack.c.h.b16 %v207
    %v804 = vunpack.c.l.b16 %v208
    %v805 = vunpack.c.h.b16 %v208
    %v806 = vunpack.c.l.b16 %v209
    %v807 = vunpack.c.h.b16 %v209
    %v808 = vunpack.c.l.b16 %v210
    %v809 = vunpack.c.h.b16 %v210
    %v810 = vunpack.c.l.b16 %v211
    %v811 = vunpack.c.h.b16 %v211
    %v812 = vunpack.c.l.b16 %v212
    %v813 = vunpack.c.h.b16 %v212
    %v814 = vunpack.c.l.b16 %v213
    %v815 = vunpack.c.h.b16 %v213
    %v816 = vunpack.c.l.b16 %v214
    %v817 = vunpack.c.h.b16 %v214
    %v818 = vunpack.c.l.b16 %v215
    %v819 = vunpack.c.h.b16 %v215
    %v820 = vunpack.c.l.b16 %v216
    %v821 = vunpack.c.h.b16 %v216
    %v822 = vunpack.c.l.b16 %v217
    %v823 = vunpack.c.h.b16 %v217
    %v824 = vunpack.c.l.b16 %v218
    %v825 = vunpack.c.h.b16 %v218
    %v826 = vunpack.c.l.b16 %v219
    %v827 = vunpack.c.h.b16 %v219
    %v828 = vunpack.c.l.b16 %v220
    %v829 = vunpack.c.h.b16 %v220
    %v830 = vunpack.c.l.b16 %v221
    %v831 = vunpack.c.h.b16 %v221
    %v832 = vunpack.c.l.b16 %v222
    %v833 = vunpack.c.h.b16 %v222
    %v834 = vunpack.c.l.b16 %v223
    %v835 = vunpack.c.h.b16 %v223
    %v836 = vunpack.c.l.b16 %v224
    %v837 = vunpack.c.h.b16 %v224
    %v838 = vunpack.c.l.b16 %v225
    %v839 = vunpack.c.h.b16 %v225
    %v840 = vunpack.c.l.b16 %v226
    %v841 = vunpack.c.h.b16 %v226
    %v842 = vunpack.c.l.b16 %v227
    %v843 = vunpack.c.h.b16 %v227
    %v844 = vunpack.c.l.b16 %v228
    %v845 = vunpack.c.h.b16 %v228
    %v846 = vunpack.c.l.b16 %v229
    %v847 = vunpack.c.h.b16 %v229
    %v848 = vunpack.c.l.b16 %v230
    %v849 = vunpack.c.h.b16 %v230
    %v850 = vunpack.c.l.b16 %v231
    %v851 = vunpack.c.h.b16 %v231
    %v852 = vunpack.c.l.b16 %v232
    %v853 = vunpack.c.h.b16 %v232
    %v854 = vunpack.c.l.b16 %v233
    %v855 = vunpack.c.h.b16 %v233
    %v856 = vunpack.c.l.b16 %v234
    %v857 = vunpack.c.h.b16 %v234
    %v858 = vunpack.c.l.b16 %v235
    %v859 = vunpack.c.h.b16 %v235
    %v860 = vunpack.c.l.b16 %v236
    %v861 = vunpack.c.h.b16 %v236
    %v862 = vunpack.c.l.b16 %v237
    %v863 = vunpack.c.h.b16 %v237
    %v864 = vunpack.c.l.b16 %v238
    %v865 = vunpack.c.h.b16 %v238
    %v866 = vunpack.c.l.b16 %v239
    %v867 = vunpack.c.h.b16 %v239
    %v868 = vunpack.c.l.b16 %v240
    %v869 = vunpack.c.h.b16 %v240
    %v870 = vunpack.c.l.b16 %v241
    %v871 = vunpack.c.h.b16 %v241
    %v872 = vunpack.c.l.b16 %v242
    %v873 = vunpack.c.h.b16 %v242
    %v874 = vunpack.c.l.b16 %v243
    %v875 = vunpack.c.h.b16 %v243
    %v876 = vunpack.c.l.b16 %v244
    %v877 = vunpack.c.h.b16 %v244
    %v878 = vunpack.c.l.b16 %v245
    %v879 = vunpack.c.h.b16 %v245
    %v880 = vunpack.c.l.b16 %v246
    %v881 = vunpack.c.h.b16 %v246
    %v882 = vunpack.c.l.b16 %v247
    %v883 = vunpack.c.h.b16 %v247
    %v884 = vunpack.c.l.b16 %v248
    %v885 = vunpack.c.h.b16 %v248
    %v886 = vunpack.c.l.b16 %v249
    %v887 = vunpack.c.h.b16 %v249
    %v888 = vunpack.c.l.b16 %v250
    %v889 = vunpack.c.h.b16 %v250
    %v890 = vunpack.c.l.b16 %v251
    %v891 = vunpack.c.h.b16 %v251
    %v892 = vunpack.c.l.b16 %v252
    %v893 = vunpack.c.h.b16 %v252
    %v894 = vunpack.c.l.b16 %v253
    %v895 = vunpack.c.h.b16 %v253
    %v896 = vunpack.c.l.b16 %v254
    %v897 = vunpack.c.h.b16 %v254
    %v898 = vunpack.c.l.b16 %v255
    %v899 = vunpack.c.h.b16 %v255
    %v900 = vunpack.c.l.b16 %v256
    %v901 = vunpack.c.h.b16 %v256
    %v902 = vunpack.c.l.b16 %v257
    %v903 = vunpack.c.h.b16 %v257
    %v904 = vunpack.c.l.b16 %v258
    %v905 = vunpack.c.h.b16 %v258
    %v906 = vunpack.c.l.b16 %v259
    %v907 = vunpack.c.h.b16 %v259
    %v908 = vunpack.c.l.b16 %v260
    %v909 = vunpack.c.h.b16 %v260
    %v910 = vunpack.c.l.b16 %v261
    %v911 = vunpack.c.h.b16 %v261
    %v912 = vunpack.c.l.b16 %v262
    %v913 = vunpack.c.h.b16 %v262
    %v914 = vunpack.c.l.b16 %v263
    %v915 = vunpack.c.h.b16 %v263
    %v916 = vunpack.c.l.b16 %v264
    %v917 = vunpack.c.h.b16 %v264
    %v918 = vunpack.c.l.b16 %v265
    %v919 = vunpack.c.h.b16 %v265
    %v920 = vunpack.c.l.b16 %v266
    %v921 = vunpack.c.h.b16 %v266
    %v922 = vunpack.c.l.b16 %v267
    %v923 = vunpack.c.h.b16 %v267
    %v924 = vunpack.c.l.b16 %v268
    %v925 = vunpack.c.h.b16 %v268
    %v926 = vunpack.c.l.b16 %v269
    %v927 = vunpack.c.h.b16 %v269
    %v928 = vunpack.c.l.b16 %v270
    %v929 = vunpack.c.h.b16 %v270
    %v930 = vunpack.c.l.b16 %v271
    %v931 = vunpack.c.h.b16 %v271
    %v932 = vunpack.c.l.b16 %v272
    %v933 = vunpack.c.h.b16 %v272
    %v934 = vunpack.c.l.b16 %v273
    %v935 = vunpack.c.h.b16 %v273
    %v936 = vunpack.c.l.b16 %v274
    %v937 = vunpack.c.h.b16 %v274
    %v938 = vunpack.c.l.b16 %v275
    %v939 = vunpack.c.h.b16 %v275
    %v940 = vunpack.c.l.b16 %v276
    %v941 = vunpack.c.h.b16 %v276
    %v942 = vunpack.c.l.b16 %v277
    %v943 = vunpack.c.h.b16 %v277
    %v944 = vunpack.c.l.b16 %v278
    %v945 = vunpack.c.h.b16 %v278
    %v946 = vunpack.c.l.b16 %v279
    %v947 = vunpack.c.h.b16 %v279
    %v948 = vunpack.c.l.b16 %v280
    %v949 = vunpack.c.h.b16 %v280
    %v950 = vunpack.c.l.b16 %v281
    %v951 = vunpack.c.h.b16 %v281
    %v952 = vunpack.c.l.b16 %v282
    %v953 = vunpack.c.h.b16 %v282
    %v954 = vunpack.c.l.b16 %v283
    %v955 = vunpack.c.h.b16 %v283
    %v956 = vunpack.c.l.b16 %v284
    %v957 = vunpack.c.h.b16 %v284
    %v958 = vunpack.c.l.b16 %v285
    %v959 = vunpack.c.h.b16 %v285
    %v960 = vunpack.c.l.b16 %v286
    %v961 = vunpack.c.h.b16 %v286
    %v962 = vunpack.c.l.b16 %v287
    %v963 = vunpack.c.h.b16 %v287
    %v964 = vunpack.c.l.b16 %v288
    %v965 = vunpack.c.h.b16 %v288
    %v966 = vunpack.c.l.b16 %v289
    %v967 = vunpack.c.h.b16 %v289
    %v968 = vunpack.c.l.b16 %v290
    %v969 = vunpack.c.h.b16 %v290
    %v970 = vunpack.c.l.b16 %v291
    %v971 = vunpack.c.h.b16 %v291
    %v972 = vunpack.c.l.b16 %v292
    %v973 = vunpack.c.h.b16 %v292
    %v974 = vunpack.c.l.b16 %v293
    %v975 = vunpack.c.h.b16 %v293
    %v976 = vunpack.c.l.b16 %v294
    %v977 = vunpack.c.h.b16 %v294
    %v978 = vunpack.c.l.b16 %v295
    %v979 = vunpack.c.h.b16 %v295
    %v980 = vunpack.c.l.b16 %v296
    %v981 = vunpack.c.h.b16 %v296
    %v982 = vunpack.c.l.b16 %v297
    %v983 = vunpack.c.h.b16 %v297
    %v984 = vunpack.c.l.b16 %v298
    %v985 = vunpack.c.h.b16 %v298
    %v986 = vunpack.c.l.b16 %v299
    %v987 = vunpack.c.h.b16 %v299
    %v988 = vunpack.c.l.b16 %v300
    %v989 = vunpack.c.h.b16 %v300
    %v990 = vunpack.c.l.b16 %v301
    %v991 = vunpack.c.h.b16 %v301
    %v992 = vunpack.c.l.b16 %v302
    %v993 = vunpack.c.h.b16 %v302
    %v994 = vunpack.c.l.b16 %v303
    %v995 = vunpack.c.h.b16 %v303
    %v996 = vunpack.c.l.b16 %v304
    %v997 = vunpack.c.h.b16 %v304
    %v998 = vunpack.c.l.b16 %v305
    %v999 = vunpack.c.h.b16 %v305
    %v1000 = vunpack.c.l.b16 %v306
    %v1001 = vunpack.c.h.b16 %v306
    %v1002 = vunpack.c.l.b16 %v307
    %v1003 = vunpack.c.h.b16 %v307
    %v1004 = vunpack.c.l.b16 %v308
    %v1005 = vunpack.c.h.b16 %v308
    %v1006 = vunpack.c.l.b16 %v309
    %v1007 = vunpack.c.h.b16 %v309
    %v1008 = vunpack.c.l.b16 %v310
    %v1009 = vunpack.c.h.b16 %v310
    %v1010 = vunpack.c.l.b16 %v311
    %v1011 = vunpack.c.h.b16 %v311
    %v1012 = vunpack.c.l.b16 %v312
    %v1013 = vunpack.c.h.b16 %v312
    %v1014 = vunpack.c.l.b16 %v313
    %v1015 = vunpack.c.h.b16 %v313
    %v1016 = vunpack.c.l.b16 %v314
    %v1017 = vunpack.c.h.b16 %v314
    %v1018 = vunpack.c.l.b16 %v315
    %v1019 = vunpack.c.h.b16 %v315
    %v1020 = vunpack.c.l.b16 %v316
    %v1021 = vunpack.c.h.b16 %v316
    %v1022 = vunpack.c.l.b16 %v317
    %v1023 = vunpack.c.h.b16 %v317
    %v1024 = vunpack.c.l.b16 %v318
    %v1025 = vunpack.c.h.b16 %v318
    %v1026 = vunpack.c.l.b16 %v319
    %v1027 = vunpack.c.h.b16 %v319
    %v1028 = vunpack.c.l.b16 %v320
    %v1029 = vunpack.c.h.b16 %v320
    %v1030 = vunpack.c.l.b16 %v321
    %v1031 = vunpack.c.h.b16 %v321
    %v1032 = vunpack.c.l.b16 %v322
    %v1033 = vunpack.c.h.b16 %v322
    %v1034 = vunpack.c.l.b16 %v323
    %v1035 = vunpack.c.h.b16 %v323
    %v1036 = vunpack.c.l.b16 %v324
    %v1037 = vunpack.c.h.b16 %v324
    %v1038 = vunpack.c.l.b16 %v325
    %v1039 = vunpack.c.h.b16 %v325
    %v1040 = vunpack.c.l.b16 %v326
    %v1041 = vunpack.c.h.b16 %v326
    %v1042 = vunpack.c.l.b16 %v327
    %v1043 = vunpack.c.h.b16 %v327
    %v1044 = vunpack.c.l.b16 %v328
    %v1045 = vunpack.c.h.b16 %v328
    %v1046 = vunpack.c.l.b16 %v329
    %v1047 = vunpack.c.h.b16 %v329
    %v1048 = vunpack.c.l.b16 %v330
    %v1049 = vunpack.c.h.b16 %v330
    %v1050 = vunpack.c.l.b16 %v331
    %v1051 = vunpack.c.h.b16 %v331
    %v1052 = vunpack.c.l.b16 %v332
    %v1053 = vunpack.c.h.b16 %v332
    %v1054 = vunpack.c.l.b16 %v333
    %v1055 = vunpack.c.h.b16 %v333
    %v1056 = vunpack.c.l.b16 %v334
    %v1057 = vunpack.c.h.b16 %v334
    %v1058 = vunpack.c.l.b16 %v335
    %v1059 = vunpack.c.h.b16 %v335
    %v1060 = vunpack.c.l.b16 %v336
    %v1061 = vunpack.c.h.b16 %v336
    %v1062 = vunpack.c.l.b16 %v337
    %v1063 = vunpack.c.h.b16 %v337
    %v1064 = vunpack.c.l.b16 %v338
    %v1065 = vunpack.c.h.b16 %v338
    %v1066 = vunpack.c.l.b16 %v339
    %v1067 = vunpack.c.h.b16 %v339
    %v1068 = vunpack.c.l.b16 %v340
    %v1069 = vunpack.c.h.b16 %v340
    %v1070 = vunpack.c.l.b16 %v341
    %v1071 = vunpack.c.h.b16 %v341
    %v1072 = vunpack.c.l.b16 %v342
    %v1073 = vunpack.c.h.b16 %v342
    %v1074 = vunpack.c.l.b16 %v343
    %v1075 = vunpack.c.h.b16 %v343
    %v1076 = vunpack.c.l.b16 %v344
    %v1077 = vunpack.c.h.b16 %v344
    %v1078 = vunpack.c.l.b16 %v345
    %v1079 = vunpack.c.h.b16 %v345
    %v1080 = vunpack.c.l.b16 %v346
    %v1081 = vunpack.c.h.b16 %v346
    %v1082 = vunpack.c.l.b16 %v347
    %v1083 = vunpack.c.h.b16 %v347
    %v1084 = vunpack.c.l.b16 %v348
    %v1085 = vunpack.c.h.b16 %v348
    %v1086 = vunpack.c.l.b16 %v349
    %v1087 = vunpack.c.h.b16 %v349
    %v1088 = vunpack.c.l.b16 %v350
    %v1089 = vunpack.c.h.b16 %v350
    %v1090 = vunpack.c.l.b16 %v351
    %v1091 = vunpack.c.h.b16 %v351
    %v1092 = vunpack.c.l.b16 %v352
    %v1093 = vunpack.c.h.b16 %v352
    %v1094 = vunpack.c.l.b16 %v353
    %v1095 = vunpack.c.h.b16 %v353
    %v1096 = vunpack.c.l.b16 %v354
    %v1097 = vunpack.c.h.b16 %v354
    %v1098 = vunpack.c.l.b16 %v355
    %v1099 = vunpack.c.h.b16 %v355
    %v1100 = vunpack.c.l.b16 %v356
    %v1101 = vunpack.c.h.b16 %v356
    %v1102 = vunpack.c.l.b16 %v357
    %v1103 = vunpack.c.h.b16 %v357
    %v1104 = vunpack.c.l.b16 %v358
    %v1105 = vunpack.c.h.b16 %v358
    %v1106 = vunpack.c.l.b16 %v359
    %v1107 = vunpack.c.h.b16 %v359
    %v1108 = vunpack.c.l.b16 %v360
    %v1109 = vunpack.c.h.b16 %v360
    %v1110 = vunpack.c.l.b16 %v361
    %v1111 = vunpack.c.h.b16 %v361
    %v1112 = vunpack.c.l.b16 %v362
    %v1113 = vunpack.c.h.b16 %v362
    %v1114 = vunpack.c.l.b16 %v363
    %v1115 = vunpack.c.h.b16 %v363
    %v1116 = vunpack.c.l.b16 %v364
    %v1117 = vunpack.c.h.b16 %v364
    %v1118 = vunpack.c.l.b16 %v365
    %v1119 = vunpack.c.h.b16 %v365
    %v1120 = vunpack.c.l.b16 %v366
    %v1121 = vunpack.c.h.b16 %v366
    %v1122 = vunpack.c.l.b16 %v367
    %v1123 = vunpack.c.h.b16 %v367
    %v1124 = vunpack.c.l.b16 %v368
    %v1125 = vunpack.c.h.b16 %v368
    %v1126 = vunpack.c.l.b16 %v369
    %v1127 = vunpack.c.h.b16 %v369
    %v1128 = vunpack.c.l.b16 %v370
    %v1129 = vunpack.c.h.b16 %v370
    %v1130 = vunpack.c.l.b16 %v371
    %v1131 = vunpack.c.h.b16 %v371
    %v1132 = vunpack.c.l.b16 %v372
    %v1133 = vunpack.c.h.b16 %v372
    %v1134 = vunpack.c.l.b16 %v373
    %v1135 = vunpack.c.h.b16 %v373
    %v1136 = vunpack.c.l.b16 %v374
    %v1137 = vunpack.c.h.b16 %v374
    %v1138 = vunpack.c.l.b16 %v375
    %v1139 = vunpack.c.h.b16 %v375
    %v1140 = vunpack.c.l.b16 %v376
    %v1141 = vunpack.c.h.b16 %v376
    %v1142 = vunpack.c.l.b16 %v377
    %v1143 = vunpack.c.h.b16 %v377
    %v1144 = vunpack.c.l.b16 %v378
    %v1145 = vunpack.c.h.b16 %v378
    %v1146 = vunpack.c.l.b16 %v379
    %v1147 = vunpack.c.h.b16 %v379
    %v1148 = vpack.c.b16 %v640, %v636
    %v1149 = vpack.c.b16 %v641, %v637
    %v1150 = vpack.c.b16 %v642, %v638
    %v1151 = vpack.c.b16 %v643, %v639
    %v1152 = vpack.c.b16 %v648, %v644
    %v1153 = vpack.c.b16 %v649, %v645
    %v1154 = vpack.c.b16 %v650, %v646
    %v1155 = vpack.c.b16 %v651, %v647
    %v1156 = vpack.c.b16 %v656, %v652
    %v1157 = vpack.c.b16 %v657, %v653
    %v1158 = vpack.c.b16 %v658, %v654
    %v1159 = vpack.c.b16 %v659, %v655
    %v1160 = vpack.c.b16 %v664, %v660
    %v1161 = vpack.c.b16 %v665, %v661
    %v1162 = vpack.c.b16 %v666, %v662
    %v1163 = vpack.c.b16 %v667, %v663
    %v1164 = vpack.c.b16 %v672, %v668
    %v1165 = vpack.c.b16 %v673, %v669
    %v1166 = vpack.c.b16 %v674, %v670
    %v1167 = vpack.c.b16 %v675, %v671
    %v1168 = vpack.c.b16 %v680, %v676
    %v1169 = vpack.c.b16 %v681, %v677
    %v1170 = vpack.c.b16 %v682, %v678
    %v1171 = vpack.c.b16 %v683, %v679
    %v1172 = vpack.c.b16 %v688, %v684
    %v1173 = vpack.c.b16 %v689, %v685
    %v1174 = vpack.c.b16 %v690, %v686
    %v1175 = vpack.c.b16 %v691, %v687
    %v1176 = vpack.c.b16 %v696, %v692
    %v1177 = vpack.c.b16 %v697, %v693
    %v1178 = vpack.c.b16 %v698, %v694
    %v1179 = vpack.c.b16 %v699, %v695
    %v1180 = vpack.c.b16 %v704, %v700
    %v1181 = vpack.c.b16 %v705, %v701
    %v1182 = vpack.c.b16 %v706, %v702
    %v1183 = vpack.c.b16 %v707, %v703
    %v1184 = vpack.c.b16 %v712, %v708
    %v1185 = vpack.c.b16 %v713, %v709
    %v1186 = vpack.c.b16 %v714, %v710
    %v1187 = vpack.c.b16 %v715, %v711
    %v1188 = vpack.c.b16 %v720, %v716
    %v1189 = vpack.c.b16 %v721, %v717
    %v1190 = vpack.c.b16 %v722, %v718
    %v1191 = vpack.c.b16 %v723, %v719
    %v1192 = vpack.c.b16 %v728, %v724
    %v1193 = vpack.c.b16 %v729, %v725
    %v1194 = vpack.c.b16 %v730, %v726
    %v1195 = vpack.c.b16 %v731, %v727
    %v1196 = vpack.c.b16 %v736, %v732
    %v1197 = vpack.c.b16 %v737, %v733
    %v1198 = vpack.c.b16 %v738, %v734
    %v1199 = vpack.c.b16 %v739, %v735
    %v1200 = vpack.c.b16 %v744, %v740
    %v1201 = vpack.c.b16 %v745, %v741
    %v1202 = vpack.c.b16 %v746, %v742
    %v1203 = vpack.c.b16 %v747, %v743
    %v1204 = vpack.c.b16 %v752, %v748
    %v1205 = vpack.c.b16 %v753, %v749
    %v1206 = vpack.c.b16 %v754, %v750
    %v1207 = vpack.c.b16 %v755, %v751
    %v1208 = vpack.c.b16 %v760, %v756
    %v1209 = vpack.c.b16 %v761, %v757
    %v1210 = vpack.c.b16 %v762, %v758
    %v1211 = vpack.c.b16 %v763, %v759
    %v1212 = vpack.c.b16 %v768, %v764
    %v1213 = vpack.c.b16 %v769, %v765
    %v1214 = vpack.c.b16 %v770, %v766
    %v1215 = vpack.c.b16 %v771, %v767
    %v1216 = vpack.c.b16 %v776, %v772
    %v1217 = vpack.c.b16 %v777, %v773
    %v1218 = vpack.c.b16 %v778, %v774
    %v1219 = vpack.c.b16 %v779, %v775
    %v1220 = vpack.c.b16 %v784, %v780
    %v1221 = vpack.c.b16 %v785, %v781
    %v1222 = vpack.c.b16 %v786, %v782
    %v1223 = vpack.c.b16 %v787, %v783
    %v1224 = vpack.c.b16 %v792, %v788
    %v1225 = vpack.c.b16 %v793, %v789
    %v1226 = vpack.c.b16 %v794, %v790
    %v1227 = vpack.c.b16 %v795, %v791
    %v1228 = vpack.c.b16 %v800, %v796
    %v1229 = vpack.c.b16 %v801, %v797
    %v1230 = vpack.c.b16 %v802, %v798
    %v1231 = vpack.c.b16 %v803, %v799
    %v1232 = vpack.c.b16 %v808, %v804
    %v1233 = vpack.c.b16 %v809, %v805
    %v1234 = vpack.c.b16 %v810, %v806
    %v1235 = vpack.c.b16 %v811, %v807
    %v1236 = vpack.c.b16 %v816, %v812
    %v1237 = vpack.c.b16 %v817, %v813
    %v1238 = vpack.c.b16 %v818, %v814
    %v1239 = vpack.c.b16 %v819, %v815
    %v1240 = vpack.c.b16 %v824, %v820
    %v1241 = vpack.c.b16 %v825, %v821
    %v1242 = vpack.c.b16 %v826, %v822
    %v1243 = vpack.c.b16 %v827, %v823
    %v1244 = vpack.c.b16 %v832, %v828
    %v1245 = vpack.c.b16 %v833, %v829
    %v1246 = vpack.c.b16 %v834, %v830
    %v1247 = vpack.c.b16 %v835, %v831
    %v1248 = vpack.c.b16 %v840, %v836
    %v1249 = vpack.c.b16 %v841, %v837
    %v1250 = vpack.c.b16 %v842, %v838
    %v1251 = vpack.c.b16 %v843, %v839
    %v1252 = vpack.c.b16 %v848, %v844
    %v1253 = vpack.c.b16 %v849, %v845
    %v1254 = vpack.c.b16 %v850, %v846
    %v1255 = vpack.c.b16 %v851, %v847
    %v1256 = vpack.c.b16 %v856, %v852
    %v1257 = vpack.c.b16 %v857, %v853
    %v1258 = vpack.c.b16 %v858, %v854
    %v1259 = vpack.c.b16 %v859, %v855
    %v1260 = vpack.c.b16 %v864, %v860
    %v1261 = vpack.c.b16 %v865, %v861
    %v1262 = vpack.c.b16 %v866, %v862
    %v1263 = vpack.c.b16 %v867, %v863
    %v1264 = vpack.c.b16 %v872, %v868
    %v1265 = vpack.c.b16 %v873, %v869
    %v1266 = vpack.c.b16 %v874, %v870
    %v1267 = vpack.c.b16 %v875, %v871
    %v1268 = vpack.c.b16 %v880, %v876
    %v1269 = vpack.c.b16 %v881, %v877
    %v1270 = vpack.c.b16 %v882, %v878
    %v1271 = vpack.c.b16 %v883, %v879
    %v1272 = vpack.c.b16 %v888, %v884
    %v1273 = vpack.c.b16 %v889, %v885
    %v1274 = vpack.c.b16 %v890, %v886
    %v1275 = vpack.c.b16 %v891, %v887
    %v1276 = vpack.c.b16 %v896, %v892
    %v1277 = vpack.c.b16 %v897, %v893
    %v1278 = vpack.c.b16 %v898, %v894
    %v1279 = vpack.c.b16 %v899, %v895
    %v1280 = vpack.c.b16 %v904, %v900
    %v1281 = vpack.c.b16 %v905, %v901
    %v1282 = vpack.c.b16 %v906, %v902
    %v1283 = vpack.c.b16 %v907, %v903
    %v1284 = vpack.c.b16 %v912, %v908
    %v1285 = vpack.c.b16 %v913, %v909
    %v1286 = vpack.c.b16 %v914, %v910
    %v1287 = vpack.c.b16 %v915, %v911
    %v1288 = vpack.c.b16 %v920, %v916
    %v1289 = vpack.c.b16 %v921, %v917
    %v1290 = vpack.c.b16 %v922, %v918
    %v1291 = vpack.c.b16 %v923, %v919
    %v1292 = vpack.c.b16 %v928, %v924
    %v1293 = vpack.c.b16 %v929, %v925
    %v1294 = vpack.c.b16 %v930, %v926
    %v1295 = vpack.c.b16 %v931, %v927
    %v1296 = vpack.c.b16 %v936, %v932
    %v1297 = vpack.c.b16 %v937, %v933
    %v1298 = vpack.c.b16 %v938, %v934
    %v1299 = vpack.c.b16 %v939, %v935
    %v1300 = vpack.c.b16 %v944, %v940
    %v1301 = vpack.c.b16 %v945, %v941
    %v1302 = vpack.c.b16 %v946, %v942
    %v1303 = vpack.c.b16 %v947, %v943
    %v1304 = vpack.c.b16 %v952, %v948
    %v1305 = vpack.c.b16 %v953, %v949
    %v1306 = vpack.c.b16 %v954, %v950
    %v1307 = vpack.c.b16 %v955, %v951
    %v1308 = vpack.c.b16 %v960, %v956
    %v1309 = vpack.c.b16 %v961, %v957
    %v1310 = vpack.c.b16 %v962, %v958
    %v1311 = vpack.c.b16 %v963, %v959
    %v1312 = vpack.c.b16 %v968, %v964
    %v1313 = vpack.c.b16 %v969, %v965
    %v1314 = vpack.c.b16 %v970, %v966
    %v1315 = vpack.c.b16 %v971, %v967
    %v1316 = vpack.c.b16 %v976, %v972
    %v1317 = vpack.c.b16 %v977, %v973
    %v1318 = vpack.c.b16 %v978, %v974
    %v1319 = vpack.c.b16 %v979, %v975
    %v1320 = vpack.c.b16 %v984, %v980
    %v1321 = vpack.c.b16 %v985, %v981
    %v1322 = vpack.c.b16 %v986, %v982
    %v1323 = vpack.c.b16 %v987, %v983
    %v1324 = vpack.c.b16 %v992, %v988
    %v1325 = vpack.c.b16 %v993, %v989
    %v1326 = vpack.c.b16 %v994, %v990
    %v1327 = vpack.c.b16 %v995, %v991
    %v1328 = vpack.c.b16 %v1000, %v996
    %v1329 = vpack.c.b16 %v1001, %v997
    %v1330 = vpack.c.b16 %v1002, %v998
    %v1331 = vpack.c.b16 %v1003, %v999
    %v1332 = vpack.c.b16 %v1008, %v1004
    %v1333 = vpack.c.b16 %v1009, %v1005
    %v1334 = vpack.c.b16 %v1010, %v1006
    %v1335 = vpack.c.b16 %v1011, %v1007
    %v1336 = vpack.c.b16 %v1016, %v1012
    %v1337 = vpack.c.b16 %v1017, %v1013
    %v1338 = vpack.c.b16 %v1018, %v1014
    %v1339 = vpack.c.b16 %v1019, %v1015
    %v1340 = vpack.c.b16 %v1024, %v1020
    %v1341 = vpack.c.b16 %v1025, %v1021
    %v1342 = vpack.c.b16 %v1026, %v1022
    %v1343 = vpack.c.b16 %v1027, %v1023
    %v1344 = vpack.c.b16 %v1032, %v1028
    %v1345 = vpack.c.b16 %v1033, %v1029
    %v1346 = vpack.c.b16 %v1034, %v1030
    %v1347 = vpack.c.b16 %v1035, %v1031
    %v1348 = vpack.c.b16 %v1040, %v1036
    %v1349 = vpack.c.b16 %v1041, %v1037
    %v1350 = vpack.c.b16 %v1042, %v1038
    %v1351 = vpack.c.b16 %v1043, %v1039
    %v1352 = vpack.c.b16 %v1048, %v1044
    %v1353 = vpack.c.b16 %v1049, %v1045
    %v1354 = vpack.c.b16 %v1050, %v1046
    %v1355 = vpack.c.b16 %v1051, %v1047
    %v1356 = vpack.c.b16 %v1056, %v1052
    %v1357 = vpack.c.b16 %v1057, %v1053
    %v1358 = vpack.c.b16 %v1058, %v1054
    %v1359 = vpack.c.b16 %v1059, %v1055
    %v1360 = vpack.c.b16 %v1064, %v1060
    %v1361 = vpack.c.b16 %v1065, %v1061
    %v1362 = vpack.c.b16 %v1066, %v1062
    %v1363 = vpack.c.b16 %v1067, %v1063
    %v1364 = vpack.c.b16 %v1072, %v1068
    %v1365 = vpack.c.b16 %v1073, %v1069
    %v1366 = vpack.c.b16 %v1074, %v1070
    %v1367 = vpack.c.b16 %v1075, %v1071
    %v1368 = vpack.c.b16 %v1080, %v1076
    %v1369 = vpack.c.b16 %v1081, %v1077
    %v1370 = vpack.c.b16 %v1082, %v1078
    %v1371 = vpack.c.b16 %v1083, %v1079
    %v1372 = vpack.c.b16 %v1088, %v1084
    %v1373 = vpack.c.b16 %v1089, %v1085
    %v1374 = vpack.c.b16 %v1090, %v1086
    %v1375 = vpack.c.b16 %v1091, %v1087
    %v1376 = vpack.c.b16 %v1096, %v1092
    %v1377 = vpack.c.b16 %v1097, %v1093
    %v1378 = vpack.c.b16 %v1098, %v1094
    %v1379 = vpack.c.b16 %v1099, %v1095
    %v1380 = vpack.c.b16 %v1104, %v1100
    %v1381 = vpack.c.b16 %v1105, %v1101
    %v1382 = vpack.c.b16 %v1106, %v1102
    %v1383 = vpack.c.b16 %v1107, %v1103
    %v1384 = vpack.c.b16 %v1112, %v1108
    %v1385 = vpack.c.b16 %v1113, %v1109
    %v1386 = vpack.c.b16 %v1114, %v1110
    %v1387 = vpack.c.b16 %v1115, %v1111
    %v1388 = vpack.c.b16 %v1120, %v1116
    %v1389 = vpack.c.b16 %v1121, %v1117
    %v1390 = vpack.c.b16 %v1122, %v1118
    %v1391 = vpack.c.b16 %v1123, %v1119
    %v1392 = vpack.c.b16 %v1128, %v1124
    %v1393 = vpack.c.b16 %v1129, %v1125
    %v1394 = vpack.c.b16 %v1130, %v1126
    %v1395 = vpack.c.b16 %v1131, %v1127
    %v1396 = vpack.c.b16 %v1136, %v1132
    %v1397 = vpack.c.b16 %v1137, %v1133
    %v1398 = vpack.c.b16 %v1138, %v1134
    %v1399 = vpack.c.b16 %v1139, %v1135
    %v1400 = vpack.c.b16 %v1144, %v1140
    %v1401 = vpack.c.b16 %v1145, %v1141
    %v1402 = vpack.c.b16 %v1146, %v1142
    %v1403 = vpack.c.b16 %v1147, %v1143
    %1660 = vmatpush.bf16.msra.mxu0 %v1176
    %1661 = vmatpush.bf16.msra.mxu0 %v1172
    %1662 = vmatpush.bf16.msra.mxu0 %v1168
    %1663 = vmatpush.bf16.msra.mxu0 %v1164
    %1664 = vmatpush.bf16.msra.mxu0 %v1160
    %1665 = vmatpush.bf16.msra.mxu0 %v1156
    %1666 = vmatpush.bf16.msra.mxu0 %v1152
    %1667 = vmatpush.bf16.msra.mxu0 %v1148
    %1668 = vmatmul.bf16.gmra.mxu0 %v115
    %v1669 = vpop.f32.mrf.mxu0
    %v1670 = vadd.f32 0.0, %v1669
    %v1671 = vpop.f32.mrf.mxu0
    %1672 = vdwg.mxu0
    %1673 = vmatpush.bf16.msra.mxu0 %v1208
    %1674 = vmatpush.bf16.msra.mxu0 %v1204
    %1675 = vmatpush.bf16.msra.mxu0 %v1200
    %1676 = vmatpush.bf16.msra.mxu0 %v1196
    %1677 = vmatpush.bf16.msra.mxu0 %v1192
    %1678 = vmatpush.bf16.msra.mxu0 %v1188
    %1679 = vmatpush.bf16.msra.mxu0 %v1184
    %1680 = vmatpush.bf16.msra.mxu0 %v1180
    %1681 = vmatmul.bf16.gmra.mxu0 %v116
    %v1682 = vpop.f32.mrf.mxu0
    %v1683 = vadd.f32 %v1670, %v1682
    %v1684 = vpop.f32.mrf.mxu0
    %1685 = vdwg.mxu0
    %1686 = vmatpush.bf16.msra.mxu0 %v1240
    %1687 = vmatpush.bf16.msra.mxu0 %v1236
    %1688 = vmatpush.bf16.msra.mxu0 %v1232
    %1689 = vmatpush.bf16.msra.mxu0 %v1228
    %1690 = vmatpush.bf16.msra.mxu0 %v1224
    %1691 = vmatpush.bf16.msra.mxu0 %v1220
    %1692 = vmatpush.bf16.msra.mxu0 %v1216
    %1693 = vmatpush.bf16.msra.mxu0 %v1212
    %1694 = vmatmul.bf16.gmra.mxu0 %v117
    %v1695 = vpop.f32.mrf.mxu0
    %v1696 = vadd.f32 %v1683, %v1695
    %v1697 = vpop.f32.mrf.mxu0
    %1698 = vdwg.mxu0
    %1699 = vmatpush.bf16.msra.mxu0 %v1272
    %1700 = vmatpush.bf16.msra.mxu0 %v1268
    %1701 = vmatpush.bf16.msra.mxu0 %v1264
    %1702 = vmatpush.bf16.msra.mxu0 %v1260
    %1703 = vmatpush.bf16.msra.mxu0 %v1256
    %1704 = vmatpush.bf16.msra.mxu0 %v1252
    %1705 = vmatpush.bf16.msra.mxu0 %v1248
    %1706 = vmatpush.bf16.msra.mxu0 %v1244
    %1707 = vmatmul.bf16.gmra.mxu0 %v118
    %v1708 = vpop.f32.mrf.mxu0
    %v1709 = vadd.f32 %v1696, %v1708
    %v1710 = vpop.f32.mrf.mxu0
    %1711 = vdwg.mxu0
    %1712 = vmatpush.bf16.msra.mxu0 %v1304
    %1713 = vmatpush.bf16.msra.mxu0 %v1300
    %1714 = vmatpush.bf16.msra.mxu0 %v1296
    %1715 = vmatpush.bf16.msra.mxu0 %v1292
    %1716 = vmatpush.bf16.msra.mxu0 %v1288
    %1717 = vmatpush.bf16.msra.mxu0 %v1284
    %1718 = vmatpush.bf16.msra.mxu0 %v1280
    %1719 = vmatpush.bf16.msra.mxu0 %v1276
    %1720 = vmatmul.bf16.gmra.mxu0 %v119
    %v1721 = vpop.f32.mrf.mxu0
    %v1722 = vadd.f32 %v1709, %v1721
    %v1723 = vpop.f32.mrf.mxu0
    %1724 = vdwg.mxu0
    %1725 = vmatpush.bf16.msra.mxu0 %v1336
    %1726 = vmatpush.bf16.msra.mxu0 %v1332
    %1727 = vmatpush.bf16.msra.mxu0 %v1328
    %1728 = vmatpush.bf16.msra.mxu0 %v1324
    %1729 = vmatpush.bf16.msra.mxu0 %v1320
    %1730 = vmatpush.bf16.msra.mxu0 %v1316
    %1731 = vmatpush.bf16.msra.mxu0 %v1312
    %1732 = vmatpush.bf16.msra.mxu0 %v1308
    %1733 = vmatmul.bf16.gmra.mxu0 %v120
    %v1734 = vpop.f32.mrf.mxu0
    %v1735 = vadd.f32 %v1722, %v1734
    %v1736 = vpop.f32.mrf.mxu0
    %1737 = vdwg.mxu0
    %1738 = vmatpush.bf16.msra.mxu0 %v1368
    %1739 = vmatpush.bf16.msra.mxu0 %v1364
    %1740 = vmatpush.bf16.msra.mxu0 %v1360
    %1741 = vmatpush.bf16.msra.mxu0 %v1356
    %1742 = vmatpush.bf16.msra.mxu0 %v1352
    %1743 = vmatpush.bf16.msra.mxu0 %v1348
    %1744 = vmatpush.bf16.msra.mxu0 %v1344
    %1745 = vmatpush.bf16.msra.mxu0 %v1340
    %1746 = vmatmul.bf16.gmra.mxu0 %v121
    %v1747 = vpop.f32.mrf.mxu0
    %v1748 = vadd.f32 %v1735, %v1747
    %v1749 = vpop.f32.mrf.mxu0
    %1750 = vdwg.mxu0
    %1751 = vmatpush.bf16.msra.mxu0 %v1400
    %1752 = vmatpush.bf16.msra.mxu0 %v1396
    %1753 = vmatpush.bf16.msra.mxu0 %v1392
    %1754 = vmatpush.bf16.msra.mxu0 %v1388
    %1755 = vmatpush.bf16.msra.mxu0 %v1384
    %1756 = vmatpush.bf16.msra.mxu0 %v1380
    %1757 = vmatpush.bf16.msra.mxu0 %v1376
    %1758 = vmatpush.bf16.msra.mxu0 %v1372
    %1759 = vmatmul.bf16.gmra.mxu0 %v122
    %v1760 = vpop.f32.mrf.mxu0
    %v1761 = vadd.f32 %v1748, %v1760
    %v1762 = vpop.f32.mrf.mxu0
    %1763 = vdwg.mxu0
    %1764 = vmatpush.bf16.msra.mxu0 %v1177
    %1765 = vmatpush.bf16.msra.mxu0 %v1173
    %1766 = vmatpush.bf16.msra.mxu0 %v1169
    %1767 = vmatpush.bf16.msra.mxu0 %v1165
    %1768 = vmatpush.bf16.msra.mxu0 %v1161
    %1769 = vmatpush.bf16.msra.mxu0 %v1157
    %1770 = vmatpush.bf16.msra.mxu0 %v1153
    %1771 = vmatpush.bf16.msra.mxu0 %v1149
    %1772 = vmatmul.bf16.gmra.mxu0 %v115
    %v1773 = vpop.f32.mrf.mxu0
    %v1774 = vadd.f32 0.0, %v1773
    %v1775 = vpop.f32.mrf.mxu0
    %1776 = vdwg.mxu0
    %1777 = vmatpush.bf16.msra.mxu0 %v1209
    %1778 = vmatpush.bf16.msra.mxu0 %v1205
    %1779 = vmatpush.bf16.msra.mxu0 %v1201
    %1780 = vmatpush.bf16.msra.mxu0 %v1197
    %1781 = vmatpush.bf16.msra.mxu0 %v1193
    %1782 = vmatpush.bf16.msra.mxu0 %v1189
    %1783 = vmatpush.bf16.msra.mxu0 %v1185
    %1784 = vmatpush.bf16.msra.mxu0 %v1181
    %1785 = vmatmul.bf16.gmra.mxu0 %v116
    %v1786 = vpop.f32.mrf.mxu0
    %v1787 = vadd.f32 %v1774, %v1786
    %v1788 = vpop.f32.mrf.mxu0
    %1789 = vdwg.mxu0
    %1790 = vmatpush.bf16.msra.mxu0 %v1241
    %1791 = vmatpush.bf16.msra.mxu0 %v1237
    %1792 = vmatpush.bf16.msra.mxu0 %v1233
    %1793 = vmatpush.bf16.msra.mxu0 %v1229
    %1794 = vmatpush.bf16.msra.mxu0 %v1225
    %1795 = vmatpush.bf16.msra.mxu0 %v1221
    %1796 = vmatpush.bf16.msra.mxu0 %v1217
    %1797 = vmatpush.bf16.msra.mxu0 %v1213
    %1798 = vmatmul.bf16.gmra.mxu0 %v117
    %v1799 = vpop.f32.mrf.mxu0
    %v1800 = vadd.f32 %v1787, %v1799
    %v1801 = vpop.f32.mrf.mxu0
    %1802 = vdwg.mxu0
    %1803 = vmatpush.bf16.msra.mxu0 %v1273
    %1804 = vmatpush.bf16.msra.mxu0 %v1269
    %1805 = vmatpush.bf16.msra.mxu0 %v1265
    %1806 = vmatpush.bf16.msra.mxu0 %v1261
    %1807 = vmatpush.bf16.msra.mxu0 %v1257
    %1808 = vmatpush.bf16.msra.mxu0 %v1253
    %1809 = vmatpush.bf16.msra.mxu0 %v1249
    %1810 = vmatpush.bf16.msra.mxu0 %v1245
    %1811 = vmatmul.bf16.gmra.mxu0 %v118
    %v1812 = vpop.f32.mrf.mxu0
    %v1813 = vadd.f32 %v1800, %v1812
    %v1814 = vpop.f32.mrf.mxu0
    %1815 = vdwg.mxu0
    %1816 = vmatpush.bf16.msra.mxu0 %v1305
    %1817 = vmatpush.bf16.msra.mxu0 %v1301
    %1818 = vmatpush.bf16.msra.mxu0 %v1297
    %1819 = vmatpush.bf16.msra.mxu0 %v1293
    %1820 = vmatpush.bf16.msra.mxu0 %v1289
    %1821 = vmatpush.bf16.msra.mxu0 %v1285
    %1822 = vmatpush.bf16.msra.mxu0 %v1281
    %1823 = vmatpush.bf16.msra.mxu0 %v1277
    %1824 = vmatmul.bf16.gmra.mxu0 %v119
    %v1825 = vpop.f32.mrf.mxu0
    %v1826 = vadd.f32 %v1813, %v1825
    %v1827 = vpop.f32.mrf.mxu0
    %1828 = vdwg.mxu0
    %1829 = vmatpush.bf16.msra.mxu0 %v1337
    %1830 = vmatpush.bf16.msra.mxu0 %v1333
    %1831 = vmatpush.bf16.msra.mxu0 %v1329
    %1832 = vmatpush.bf16.msra.mxu0 %v1325
    %1833 = vmatpush.bf16.msra.mxu0 %v1321
    %1834 = vmatpush.bf16.msra.mxu0 %v1317
    %1835 = vmatpush.bf16.msra.mxu0 %v1313
    %1836 = vmatpush.bf16.msra.mxu0 %v1309
    %1837 = vmatmul.bf16.gmra.mxu0 %v120
    %v1838 = vpop.f32.mrf.mxu0
    %v1839 = vadd.f32 %v1826, %v1838
    %v1840 = vpop.f32.mrf.mxu0
    %1841 = vdwg.mxu0
    %1842 = vmatpush.bf16.msra.mxu0 %v1369
    %1843 = vmatpush.bf16.msra.mxu0 %v1365
    %1844 = vmatpush.bf16.msra.mxu0 %v1361
    %1845 = vmatpush.bf16.msra.mxu0 %v1357
    %1846 = vmatpush.bf16.msra.mxu0 %v1353
    %1847 = vmatpush.bf16.msra.mxu0 %v1349
    %1848 = vmatpush.bf16.msra.mxu0 %v1345
    %1849 = vmatpush.bf16.msra.mxu0 %v1341
    %1850 = vmatmul.bf16.gmra.mxu0 %v121
    %v1851 = vpop.f32.mrf.mxu0
    %v1852 = vadd.f32 %v1839, %v1851
    %v1853 = vpop.f32.mrf.mxu0
    %1854 = vdwg.mxu0
    %1855 = vmatpush.bf16.msra.mxu0 %v1401
    %1856 = vmatpush.bf16.msra.mxu0 %v1397
    %1857 = vmatpush.bf16.msra.mxu0 %v1393
    %1858 = vmatpush.bf16.msra.mxu0 %v1389
    %1859 = vmatpush.bf16.msra.mxu0 %v1385
    %1860 = vmatpush.bf16.msra.mxu0 %v1381
    %1861 = vmatpush.bf16.msra.mxu0 %v1377
    %1862 = vmatpush.bf16.msra.mxu0 %v1373
    %1863 = vmatmul.bf16.gmra.mxu0 %v122
    %v1864 = vpop.f32.mrf.mxu0
    %v1865 = vadd.f32 %v1852, %v1864
    %v1866 = vpop.f32.mrf.mxu0
    %1867 = vdwg.mxu0
    %1868 = vmatpush.bf16.msra.mxu0 %v1178
    %1869 = vmatpush.bf16.msra.mxu0 %v1174
    %1870 = vmatpush.bf16.msra.mxu0 %v1170
    %1871 = vmatpush.bf16.msra.mxu0 %v1166
    %1872 = vmatpush.bf16.msra.mxu0 %v1162
    %1873 = vmatpush.bf16.msra.mxu0 %v1158
    %1874 = vmatpush.bf16.msra.mxu0 %v1154
    %1875 = vmatpush.bf16.msra.mxu0 %v1150
    %1876 = vmatmul.bf16.gmra.mxu0 %v115
    %v1877 = vpop.f32.mrf.mxu0
    %v1878 = vadd.f32 0.0, %v1877
    %v1879 = vpop.f32.mrf.mxu0
    %1880 = vdwg.mxu0
    %1881 = vmatpush.bf16.msra.mxu0 %v1210
    %1882 = vmatpush.bf16.msra.mxu0 %v1206
    %1883 = vmatpush.bf16.msra.mxu0 %v1202
    %1884 = vmatpush.bf16.msra.mxu0 %v1198
    %1885 = vmatpush.bf16.msra.mxu0 %v1194
    %1886 = vmatpush.bf16.msra.mxu0 %v1190
    %1887 = vmatpush.bf16.msra.mxu0 %v1186
    %1888 = vmatpush.bf16.msra.mxu0 %v1182
    %1889 = vmatmul.bf16.gmra.mxu0 %v116
    %v1890 = vpop.f32.mrf.mxu0
    %v1891 = vadd.f32 %v1878, %v1890
    %v1892 = vpop.f32.mrf.mxu0
    %1893 = vdwg.mxu0
    %1894 = vmatpush.bf16.msra.mxu0 %v1242
    %1895 = vmatpush.bf16.msra.mxu0 %v1238
    %1896 = vmatpush.bf16.msra.mxu0 %v1234
    %1897 = vmatpush.bf16.msra.mxu0 %v1230
    %1898 = vmatpush.bf16.msra.mxu0 %v1226
    %1899 = vmatpush.bf16.msra.mxu0 %v1222
    %1900 = vmatpush.bf16.msra.mxu0 %v1218
    %1901 = vmatpush.bf16.msra.mxu0 %v1214
    %1902 = vmatmul.bf16.gmra.mxu0 %v117
    %v1903 = vpop.f32.mrf.mxu0
    %v1904 = vadd.f32 %v1891, %v1903
    %v1905 = vpop.f32.mrf.mxu0
    %1906 = vdwg.mxu0
    %1907 = vmatpush.bf16.msra.mxu0 %v1274
    %1908 = vmatpush.bf16.msra.mxu0 %v1270
    %1909 = vmatpush.bf16.msra.mxu0 %v1266
    %1910 = vmatpush.bf16.msra.mxu0 %v1262
    %1911 = vmatpush.bf16.msra.mxu0 %v1258
    %1912 = vmatpush.bf16.msra.mxu0 %v1254
    %1913 = vmatpush.bf16.msra.mxu0 %v1250
    %1914 = vmatpush.bf16.msra.mxu0 %v1246
    %1915 = vmatmul.bf16.gmra.mxu0 %v118
    %v1916 = vpop.f32.mrf.mxu0
    %v1917 = vadd.f32 %v1904, %v1916
    %v1918 = vpop.f32.mrf.mxu0
    %1919 = vdwg.mxu0
    %1920 = vmatpush.bf16.msra.mxu0 %v1306
    %1921 = vmatpush.bf16.msra.mxu0 %v1302
    %1922 = vmatpush.bf16.msra.mxu0 %v1298
    %1923 = vmatpush.bf16.msra.mxu0 %v1294
    %1924 = vmatpush.bf16.msra.mxu0 %v1290
    %1925 = vmatpush.bf16.msra.mxu0 %v1286
    %1926 = vmatpush.bf16.msra.mxu0 %v1282
    %1927 = vmatpush.bf16.msra.mxu0 %v1278
    %1928 = vmatmul.bf16.gmra.mxu0 %v119
    %v1929 = vpop.f32.mrf.mxu0
    %v1930 = vadd.f32 %v1917, %v1929
    %v1931 = vpop.f32.mrf.mxu0
    %1932 = vdwg.mxu0
    %1933 = vmatpush.bf16.msra.mxu0 %v1338
    %1934 = vmatpush.bf16.msra.mxu0 %v1334
    %1935 = vmatpush.bf16.msra.mxu0 %v1330
    %1936 = vmatpush.bf16.msra.mxu0 %v1326
    %1937 = vmatpush.bf16.msra.mxu0 %v1322
    %1938 = vmatpush.bf16.msra.mxu0 %v1318
    %1939 = vmatpush.bf16.msra.mxu0 %v1314
    %1940 = vmatpush.bf16.msra.mxu0 %v1310
    %1941 = vmatmul.bf16.gmra.mxu0 %v120
    %v1942 = vpop.f32.mrf.mxu0
    %v1943 = vadd.f32 %v1930, %v1942
    %v1944 = vpop.f32.mrf.mxu0
    %1945 = vdwg.mxu0
    %1946 = vmatpush.bf16.msra.mxu0 %v1370
    %1947 = vmatpush.bf16.msra.mxu0 %v1366
    %1948 = vmatpush.bf16.msra.mxu0 %v1362
    %1949 = vmatpush.bf16.msra.mxu0 %v1358
    %1950 = vmatpush.bf16.msra.mxu0 %v1354
    %1951 = vmatpush.bf16.msra.mxu0 %v1350
    %1952 = vmatpush.bf16.msra.mxu0 %v1346
    %1953 = vmatpush.bf16.msra.mxu0 %v1342
    %1954 = vmatmul.bf16.gmra.mxu0 %v121
    %v1955 = vpop.f32.mrf.mxu0
    %v1956 = vadd.f32 %v1943, %v1955
    %v1957 = vpop.f32.mrf.mxu0
    %1958 = vdwg.mxu0
    %1959 = vmatpush.bf16.msra.mxu0 %v1402
    %1960 = vmatpush.bf16.msra.mxu0 %v1398
    %1961 = vmatpush.bf16.msra.mxu0 %v1394
    %1962 = vmatpush.bf16.msra.mxu0 %v1390
    %1963 = vmatpush.bf16.msra.mxu0 %v1386
    %1964 = vmatpush.bf16.msra.mxu0 %v1382
    %1965 = vmatpush.bf16.msra.mxu0 %v1378
    %1966 = vmatpush.bf16.msra.mxu0 %v1374
    %1967 = vmatmul.bf16.gmra.mxu0 %v122
    %v1968 = vpop.f32.mrf.mxu0
    %v1969 = vadd.f32 %v1956, %v1968
    %v1970 = vpop.f32.mrf.mxu0
    %1971 = vdwg.mxu0
    %1972 = vmatpush.bf16.msra.mxu0 %v1179
    %1973 = vmatpush.bf16.msra.mxu0 %v1175
    %1974 = vmatpush.bf16.msra.mxu0 %v1171
    %1975 = vmatpush.bf16.msra.mxu0 %v1167
    %1976 = vmatpush.bf16.msra.mxu0 %v1163
    %1977 = vmatpush.bf16.msra.mxu0 %v1159
    %1978 = vmatpush.bf16.msra.mxu0 %v1155
    %1979 = vmatpush.bf16.msra.mxu0 %v1151
    %1980 = vmatmul.bf16.gmra.mxu0 %v115
    %v1981 = vpop.f32.mrf.mxu0
    %v1982 = vadd.f32 0.0, %v1981
    %v1983 = vpop.f32.mrf.mxu0
    %1984 = vdwg.mxu0
    %1985 = vmatpush.bf16.msra.mxu0 %v1211
    %1986 = vmatpush.bf16.msra.mxu0 %v1207
    %1987 = vmatpush.bf16.msra.mxu0 %v1203
    %1988 = vmatpush.bf16.msra.mxu0 %v1199
    %1989 = vmatpush.bf16.msra.mxu0 %v1195
    %1990 = vmatpush.bf16.msra.mxu0 %v1191
    %1991 = vmatpush.bf16.msra.mxu0 %v1187
    %1992 = vmatpush.bf16.msra.mxu0 %v1183
    %1993 = vmatmul.bf16.gmra.mxu0 %v116
    %v1994 = vpop.f32.mrf.mxu0
    %v1995 = vadd.f32 %v1982, %v1994
    %v1996 = vpop.f32.mrf.mxu0
    %1997 = vdwg.mxu0
    %1998 = vmatpush.bf16.msra.mxu0 %v1243
    %1999 = vmatpush.bf16.msra.mxu0 %v1239
    %2000 = vmatpush.bf16.msra.mxu0 %v1235
    %2001 = vmatpush.bf16.msra.mxu0 %v1231
    %2002 = vmatpush.bf16.msra.mxu0 %v1227
    %2003 = vmatpush.bf16.msra.mxu0 %v1223
    %2004 = vmatpush.bf16.msra.mxu0 %v1219
    %2005 = vmatpush.bf16.msra.mxu0 %v1215
    %2006 = vmatmul.bf16.gmra.mxu0 %v117
    %v2007 = vpop.f32.mrf.mxu0
    %v2008 = vadd.f32 %v1995, %v2007
    %v2009 = vpop.f32.mrf.mxu0
    %2010 = vdwg.mxu0
    %2011 = vmatpush.bf16.msra.mxu0 %v1275
    %2012 = vmatpush.bf16.msra.mxu0 %v1271
    %2013 = vmatpush.bf16.msra.mxu0 %v1267
    %2014 = vmatpush.bf16.msra.mxu0 %v1263
    %2015 = vmatpush.bf16.msra.mxu0 %v1259
    %2016 = vmatpush.bf16.msra.mxu0 %v1255
    %2017 = vmatpush.bf16.msra.mxu0 %v1251
    %2018 = vmatpush.bf16.msra.mxu0 %v1247
    %2019 = vmatmul.bf16.gmra.mxu0 %v118
    %v2020 = vpop.f32.mrf.mxu0
    %v2021 = vadd.f32 %v2008, %v2020
    %v2022 = vpop.f32.mrf.mxu0
    %2023 = vdwg.mxu0
    %2024 = vmatpush.bf16.msra.mxu0 %v1307
    %2025 = vmatpush.bf16.msra.mxu0 %v1303
    %2026 = vmatpush.bf16.msra.mxu0 %v1299
    %2027 = vmatpush.bf16.msra.mxu0 %v1295
    %2028 = vmatpush.bf16.msra.mxu0 %v1291
    %2029 = vmatpush.bf16.msra.mxu0 %v1287
    %2030 = vmatpush.bf16.msra.mxu0 %v1283
    %2031 = vmatpush.bf16.msra.mxu0 %v1279
    %2032 = vmatmul.bf16.gmra.mxu0 %v119
    %v2033 = vpop.f32.mrf.mxu0
    %v2034 = vadd.f32 %v2021, %v2033
    %v2035 = vpop.f32.mrf.mxu0
    %2036 = vdwg.mxu0
    %2037 = vmatpush.bf16.msra.mxu0 %v1339
    %2038 = vmatpush.bf16.msra.mxu0 %v1335
    %2039 = vmatpush.bf16.msra.mxu0 %v1331
    %2040 = vmatpush.bf16.msra.mxu0 %v1327
    %2041 = vmatpush.bf16.msra.mxu0 %v1323
    %2042 = vmatpush.bf16.msra.mxu0 %v1319
    %2043 = vmatpush.bf16.msra.mxu0 %v1315
    %2044 = vmatpush.bf16.msra.mxu0 %v1311
    %2045 = vmatmul.bf16.gmra.mxu0 %v120
    %v2046 = vpop.f32.mrf.mxu0
    %v2047 = vadd.f32 %v2034, %v2046
    %v2048 = vpop.f32.mrf.mxu0
    %2049 = vdwg.mxu0
    %2050 = vmatpush.bf16.msra.mxu0 %v1371
    %2051 = vmatpush.bf16.msra.mxu0 %v1367
    %2052 = vmatpush.bf16.msra.mxu0 %v1363
    %2053 = vmatpush.bf16.msra.mxu0 %v1359
    %2054 = vmatpush.bf16.msra.mxu0 %v1355
    %2055 = vmatpush.bf16.msra.mxu0 %v1351
    %2056 = vmatpush.bf16.msra.mxu0 %v1347
    %2057 = vmatpush.bf16.msra.mxu0 %v1343
    %2058 = vmatmul.bf16.gmra.mxu0 %v121
    %v2059 = vpop.f32.mrf.mxu0
    %v2060 = vadd.f32 %v2047, %v2059
    %v2061 = vpop.f32.mrf.mxu0
    %2062 = vdwg.mxu0
    %2063 = vmatpush.bf16.msra.mxu0 %v1403
    %2064 = vmatpush.bf16.msra.mxu0 %v1399
    %2065 = vmatpush.bf16.msra.mxu0 %v1395
    %2066 = vmatpush.bf16.msra.mxu0 %v1391
    %2067 = vmatpush.bf16.msra.mxu0 %v1387
    %2068 = vmatpush.bf16.msra.mxu0 %v1383
    %2069 = vmatpush.bf16.msra.mxu0 %v1379
    %2070 = vmatpush.bf16.msra.mxu0 %v1375
    %2071 = vmatmul.bf16.gmra.mxu0 %v122
    %v2072 = vpop.f32.mrf.mxu0
    %v2073 = vadd.f32 %v2060, %v2072
    %v2074 = vpop.f32.mrf.mxu0
    %2075 = vdwg.mxu0
    %v2080 = vrot.slane %v1865, 6
    %v2081 = vrot.slane %v1969, 4
    %v2082 = vrot.slane %v2073, 2
    %vm2083 = vcmask 1041408
    %v2084 = vsel %vm2083, %v1761, %v2080
    %vm2085 = vcmask 1045508
    %v2086 = vsel %vm2085, %v2081, %v2082
    %vm2087 = vcmask 1043456
    %v2088 = vsel %vm2087, %v2084, %v2086
    %v2090 = vadd.f32 %v123, %v2088
    %2091 = vst [vmem:[#allocation2] sm:$0xff] %v2090
    // Predicated region
    $region50: #{tpu_custom_call.1} parent=1 // pred_check
      %p2092 = pneg %p87
    $region51: #{tpu_custom_call.1} parent=1 // pred_check_branch
      %2094 = sbr.rel (%p2092) target = $region53
    $region52: #{tpu_custom_call.1} parent=1 // pred_region
      %v2095 = vld [vmem:[#allocation2] sm:$0xff]
      %v2096 = vld [vmem:[#allocation8] sm:$0xf]
      %v2098 = vperm.slane %v2096, 0
      %v2099 = vperm.slane %v2096, 1
      %v2100 = vperm.slane %v2096, 2
      %v2101 = vperm.slane %v2096, 3
      %v2102 = vrot.slane %v2099, 6
      %v2103 = vrot.slane %v2100, 4
      %v2104 = vrot.slane %v2101, 2
      %v2105 = vsel %vm2083, %v2098, %v2102
      %v2106 = vsel %vm2085, %v2103, %v2104
      %v2107 = vsel %vm2087, %v2105, %v2106
      %v2109 = vadd.f32 %v2095, %v2107
      %vm2110 = vcmp.gt.f32.partialorder %v2109, 0.0
      %v2111 = vmul.f32 %v2109, 0.2
      %v2112 = vsel %vm2110, %v2109, %v2111
      %2114 = vst [vmem:[#allocation1] ss:$4 sm:$0xff] %v2112
      %v2115 = vld.sshfl [vmem:[#allocation1] sm:$0xff pattern:$0x73625140]
      %v2116 = vld.sshfl [vmem:[#allocation1 + $0x8] sm:$0xff pattern:$0x73625140]
      %v2117 = vld.sshfl [vmem:[#allocation1 + $0x10] sm:$0xff pattern:$0x73625140]
      %v2118 = vld.sshfl [vmem:[#allocation1 + $0x18] sm:$0xff pattern:$0x73625140]
      %v2123 = vpack.c.bf16 %v2115, %v2115
      %v2124 = vpack.c.bf16 %v2116, %v2116
      %v2125 = vpack.c.bf16 %v2117, %v2117
      %v2126 = vpack.c.bf16 %v2118, %v2118
      %v2127 = vld [vmem:[#allocation9] sm:$0xff]
      %v2128 = vld [vmem:[#allocation9 + $0x8] sm:$0xff]
      %v2129 = vld [vmem:[#allocation9 + $0x10] sm:$0xff]
      %v2130 = vld [vmem:[#allocation9 + $0x18] sm:$0xff]
      %v2131 = vld [vmem:[#allocation9 + $0x20] sm:$0xff]
      %v2132 = vld [vmem:[#allocation9 + $0x28] sm:$0xff]
      %v2133 = vld [vmem:[#allocation9 + $0x30] sm:$0xff]
      %v2134 = vld [vmem:[#allocation9 + $0x38] sm:$0xff]
      %v2135 = vld [vmem:[#allocation9 + $0x40] sm:$0xff]
      %v2136 = vld [vmem:[#allocation9 + $0x48] sm:$0xff]
      %v2137 = vld [vmem:[#allocation9 + $0x50] sm:$0xff]
      %v2138 = vld [vmem:[#allocation9 + $0x58] sm:$0xff]
      %v2139 = vld [vmem:[#allocation9 + $0x60] sm:$0xff]
      %v2140 = vld [vmem:[#allocation9 + $0x68] sm:$0xff]
      %v2141 = vld [vmem:[#allocation9 + $0x70] sm:$0xff]
      %v2142 = vld [vmem:[#allocation9 + $0x78] sm:$0xff]
      %v2143 = vld [vmem:[#allocation9 + $0x80] sm:$0xff]
      %v2144 = vld [vmem:[#allocation9 + $0x88] sm:$0xff]
      %v2145 = vld [vmem:[#allocation9 + $0x90] sm:$0xff]
      %v2146 = vld [vmem:[#allocation9 + $0x98] sm:$0xff]
      %v2147 = vld [vmem:[#allocation9 + $0xa0] sm:$0xff]
      %v2148 = vld [vmem:[#allocation9 + $0xa8] sm:$0xff]
      %v2149 = vld [vmem:[#allocation9 + $0xb0] sm:$0xff]
      %v2150 = vld [vmem:[#allocation9 + $0xb8] sm:$0xff]
      %v2151 = vld [vmem:[#allocation9 + $0xc0] sm:$0xff]
      %v2152 = vld [vmem:[#allocation9 + $0xc8] sm:$0xff]
      %v2153 = vld [vmem:[#allocation9 + $0xd0] sm:$0xff]
      %v2154 = vld [vmem:[#allocation9 + $0xd8] sm:$0xff]
      %v2155 = vld [vmem:[#allocation9 + $0xe0] sm:$0xff]
      %v2156 = vld [vmem:[#allocation9 + $0xe8] sm:$0xff]
      %v2157 = vld [vmem:[#allocation9 + $0xf0] sm:$0xff]
      %v2158 = vld [vmem:[#allocation9 + $0xf8] sm:$0xff]
      %v2159 = vld [vmem:[#allocation9 + $0x100] sm:$0xff]
      %v2160 = vld [vmem:[#allocation9 + $0x108] sm:$0xff]
      %v2161 = vld [vmem:[#allocation9 + $0x110] sm:$0xff]
      %v2162 = vld [vmem:[#allocation9 + $0x118] sm:$0xff]
      %v2163 = vld [vmem:[#allocation9 + $0x120] sm:$0xff]
      %v2164 = vld [vmem:[#allocation9 + $0x128] sm:$0xff]
      %v2165 = vld [vmem:[#allocation9 + $0x130] sm:$0xff]
      %v2166 = vld [vmem:[#allocation9 + $0x138] sm:$0xff]
      %v2167 = vld [vmem:[#allocation9 + $0x140] sm:$0xff]
      %v2168 = vld [vmem:[#allocation9 + $0x148] sm:$0xff]
      %v2169 = vld [vmem:[#allocation9 + $0x150] sm:$0xff]
      %v2170 = vld [vmem:[#allocation9 + $0x158] sm:$0xff]
      %v2171 = vld [vmem:[#allocation9 + $0x160] sm:$0xff]
      %v2172 = vld [vmem:[#allocation9 + $0x168] sm:$0xff]
      %v2173 = vld [vmem:[#allocation9 + $0x170] sm:$0xff]
      %v2174 = vld [vmem:[#allocation9 + $0x178] sm:$0xff]
      %v2175 = vld [vmem:[#allocation9 + $0x180] sm:$0xff]
      %v2176 = vld [vmem:[#allocation9 + $0x188] sm:$0xff]
      %v2177 = vld [vmem:[#allocation9 + $0x190] sm:$0xff]
      %v2178 = vld [vmem:[#allocation9 + $0x198] sm:$0xff]
      %v2179 = vld [vmem:[#allocation9 + $0x1a0] sm:$0xff]
      %v2180 = vld [vmem:[#allocation9 + $0x1a8] sm:$0xff]
      %v2181 = vld [vmem:[#allocation9 + $0x1b0] sm:$0xff]
      %v2182 = vld [vmem:[#allocation9 + $0x1b8] sm:$0xff]
      %v2183 = vld [vmem:[#allocation9 + $0x1c0] sm:$0xff]
      %v2184 = vld [vmem:[#allocation9 + $0x1c8] sm:$0xff]
      %v2185 = vld [vmem:[#allocation9 + $0x1d0] sm:$0xff]
      %v2186 = vld [vmem:[#allocation9 + $0x1d8] sm:$0xff]
      %v2187 = vld [vmem:[#allocation9 + $0x1e0] sm:$0xff]
      %v2188 = vld [vmem:[#allocation9 + $0x1e8] sm:$0xff]
      %v2189 = vld [vmem:[#allocation9 + $0x1f0] sm:$0xff]
      %v2190 = vld [vmem:[#allocation9 + $0x1f8] sm:$0xff]
      %v2191 = vld [vmem:[%s4] sm:$0x3]
      %v2193 = vperm.slane %v2191, 0
      %v2194 = vperm.slane %v2191, 1
      %v2261 = vunpack.c.l.b16 %v2127
      %v2262 = vunpack.c.h.b16 %v2127
      %v2263 = vunpack.c.l.b16 %v2128
      %v2264 = vunpack.c.h.b16 %v2128
      %v2265 = vunpack.c.l.b16 %v2129
      %v2266 = vunpack.c.h.b16 %v2129
      %v2267 = vunpack.c.l.b16 %v2130
      %v2268 = vunpack.c.h.b16 %v2130
      %v2269 = vunpack.c.l.b16 %v2131
      %v2270 = vunpack.c.h.b16 %v2131
      %v2271 = vunpack.c.l.b16 %v2132
      %v2272 = vunpack.c.h.b16 %v2132
      %v2273 = vunpack.c.l.b16 %v2133
      %v2274 = vunpack.c.h.b16 %v2133
      %v2275 = vunpack.c.l.b16 %v2134
      %v2276 = vunpack.c.h.b16 %v2134
      %v2277 = vunpack.c.l.b16 %v2135
      %v2278 = vunpack.c.h.b16 %v2135
      %v2279 = vunpack.c.l.b16 %v2136
      %v2280 = vunpack.c.h.b16 %v2136
      %v2281 = vunpack.c.l.b16 %v2137
      %v2282 = vunpack.c.h.b16 %v2137
      %v2283 = vunpack.c.l.b16 %v2138
      %v2284 = vunpack.c.h.b16 %v2138
      %v2285 = vunpack.c.l.b16 %v2139
      %v2286 = vunpack.c.h.b16 %v2139
      %v2287 = vunpack.c.l.b16 %v2140
      %v2288 = vunpack.c.h.b16 %v2140
      %v2289 = vunpack.c.l.b16 %v2141
      %v2290 = vunpack.c.h.b16 %v2141
      %v2291 = vunpack.c.l.b16 %v2142
      %v2292 = vunpack.c.h.b16 %v2142
      %v2293 = vunpack.c.l.b16 %v2143
      %v2294 = vunpack.c.h.b16 %v2143
      %v2295 = vunpack.c.l.b16 %v2144
      %v2296 = vunpack.c.h.b16 %v2144
      %v2297 = vunpack.c.l.b16 %v2145
      %v2298 = vunpack.c.h.b16 %v2145
      %v2299 = vunpack.c.l.b16 %v2146
      %v2300 = vunpack.c.h.b16 %v2146
      %v2301 = vunpack.c.l.b16 %v2147
      %v2302 = vunpack.c.h.b16 %v2147
      %v2303 = vunpack.c.l.b16 %v2148
      %v2304 = vunpack.c.h.b16 %v2148
      %v2305 = vunpack.c.l.b16 %v2149
      %v2306 = vunpack.c.h.b16 %v2149
      %v2307 = vunpack.c.l.b16 %v2150
      %v2308 = vunpack.c.h.b16 %v2150
      %v2309 = vunpack.c.l.b16 %v2151
      %v2310 = vunpack.c.h.b16 %v2151
      %v2311 = vunpack.c.l.b16 %v2152
      %v2312 = vunpack.c.h.b16 %v2152
      %v2313 = vunpack.c.l.b16 %v2153
      %v2314 = vunpack.c.h.b16 %v2153
      %v2315 = vunpack.c.l.b16 %v2154
      %v2316 = vunpack.c.h.b16 %v2154
      %v2317 = vunpack.c.l.b16 %v2155
      %v2318 = vunpack.c.h.b16 %v2155
      %v2319 = vunpack.c.l.b16 %v2156
      %v2320 = vunpack.c.h.b16 %v2156
      %v2321 = vunpack.c.l.b16 %v2157
      %v2322 = vunpack.c.h.b16 %v2157
      %v2323 = vunpack.c.l.b16 %v2158
      %v2324 = vunpack.c.h.b16 %v2158
      %v2325 = vunpack.c.l.b16 %v2159
      %v2326 = vunpack.c.h.b16 %v2159
      %v2327 = vunpack.c.l.b16 %v2160
      %v2328 = vunpack.c.h.b16 %v2160
      %v2329 = vunpack.c.l.b16 %v2161
      %v2330 = vunpack.c.h.b16 %v2161
      %v2331 = vunpack.c.l.b16 %v2162
      %v2332 = vunpack.c.h.b16 %v2162
      %v2333 = vunpack.c.l.b16 %v2163
      %v2334 = vunpack.c.h.b16 %v2163
      %v2335 = vunpack.c.l.b16 %v2164
      %v2336 = vunpack.c.h.b16 %v2164
      %v2337 = vunpack.c.l.b16 %v2165
      %v2338 = vunpack.c.h.b16 %v2165
      %v2339 = vunpack.c.l.b16 %v2166
      %v2340 = vunpack.c.h.b16 %v2166
      %v2341 = vunpack.c.l.b16 %v2167
      %v2342 = vunpack.c.h.b16 %v2167
      %v2343 = vunpack.c.l.b16 %v2168
      %v2344 = vunpack.c.h.b16 %v2168
      %v2345 = vunpack.c.l.b16 %v2169
      %v2346 = vunpack.c.h.b16 %v2169
      %v2347 = vunpack.c.l.b16 %v2170
      %v2348 = vunpack.c.h.b16 %v2170
      %v2349 = vunpack.c.l.b16 %v2171
      %v2350 = vunpack.c.h.b16 %v2171
      %v2351 = vunpack.c.l.b16 %v2172
      %v2352 = vunpack.c.h.b16 %v2172
      %v2353 = vunpack.c.l.b16 %v2173
      %v2354 = vunpack.c.h.b16 %v2173
      %v2355 = vunpack.c.l.b16 %v2174
      %v2356 = vunpack.c.h.b16 %v2174
      %v2357 = vunpack.c.l.b16 %v2175
      %v2358 = vunpack.c.h.b16 %v2175
      %v2359 = vunpack.c.l.b16 %v2176
      %v2360 = vunpack.c.h.b16 %v2176
      %v2361 = vunpack.c.l.b16 %v2177
      %v2362 = vunpack.c.h.b16 %v2177
      %v2363 = vunpack.c.l.b16 %v2178
      %v2364 = vunpack.c.h.b16 %v2178
      %v2365 = vunpack.c.l.b16 %v2179
      %v2366 = vunpack.c.h.b16 %v2179
      %v2367 = vunpack.c.l.b16 %v2180
      %v2368 = vunpack.c.h.b16 %v2180
      %v2369 = vunpack.c.l.b16 %v2181
      %v2370 = vunpack.c.h.b16 %v2181
      %v2371 = vunpack.c.l.b16 %v2182
      %v2372 = vunpack.c.h.b16 %v2182
      %v2373 = vunpack.c.l.b16 %v2183
      %v2374 = vunpack.c.h.b16 %v2183
      %v2375 = vunpack.c.l.b16 %v2184
      %v2376 = vunpack.c.h.b16 %v2184
      %v2377 = vunpack.c.l.b16 %v2185
      %v2378 = vunpack.c.h.b16 %v2185
      %v2379 = vunpack.c.l.b16 %v2186
      %v2380 = vunpack.c.h.b16 %v2186
      %v2381 = vunpack.c.l.b16 %v2187
      %v2382 = vunpack.c.h.b16 %v2187
      %v2383 = vunpack.c.l.b16 %v2188
      %v2384 = vunpack.c.h.b16 %v2188
      %v2385 = vunpack.c.l.b16 %v2189
      %v2386 = vunpack.c.h.b16 %v2189
      %v2387 = vunpack.c.l.b16 %v2190
      %v2388 = vunpack.c.h.b16 %v2190
      %v2389 = vpack.c.b16 %v2263, %v2261
      %v2390 = vpack.c.b16 %v2264, %v2262
      %v2391 = vpack.c.b16 %v2267, %v2265
      %v2392 = vpack.c.b16 %v2268, %v2266
      %v2393 = vpack.c.b16 %v2271, %v2269
      %v2394 = vpack.c.b16 %v2272, %v2270
      %v2395 = vpack.c.b16 %v2275, %v2273
      %v2396 = vpack.c.b16 %v2276, %v2274
      %v2397 = vpack.c.b16 %v2279, %v2277
      %v2398 = vpack.c.b16 %v2280, %v2278
      %v2399 = vpack.c.b16 %v2283, %v2281
      %v2400 = vpack.c.b16 %v2284, %v2282
      %v2401 = vpack.c.b16 %v2287, %v2285
      %v2402 = vpack.c.b16 %v2288, %v2286
      %v2403 = vpack.c.b16 %v2291, %v2289
      %v2404 = vpack.c.b16 %v2292, %v2290
      %v2405 = vpack.c.b16 %v2295, %v2293
      %v2406 = vpack.c.b16 %v2296, %v2294
      %v2407 = vpack.c.b16 %v2299, %v2297
      %v2408 = vpack.c.b16 %v2300, %v2298
      %v2409 = vpack.c.b16 %v2303, %v2301
      %v2410 = vpack.c.b16 %v2304, %v2302
      %v2411 = vpack.c.b16 %v2307, %v2305
      %v2412 = vpack.c.b16 %v2308, %v2306
      %v2413 = vpack.c.b16 %v2311, %v2309
      %v2414 = vpack.c.b16 %v2312, %v2310
      %v2415 = vpack.c.b16 %v2315, %v2313
      %v2416 = vpack.c.b16 %v2316, %v2314
      %v2417 = vpack.c.b16 %v2319, %v2317
      %v2418 = vpack.c.b16 %v2320, %v2318
      %v2419 = vpack.c.b16 %v2323, %v2321
      %v2420 = vpack.c.b16 %v2324, %v2322
      %v2421 = vpack.c.b16 %v2327, %v2325
      %v2422 = vpack.c.b16 %v2328, %v2326
      %v2423 = vpack.c.b16 %v2331, %v2329
      %v2424 = vpack.c.b16 %v2332, %v2330
      %v2425 = vpack.c.b16 %v2335, %v2333
      %v2426 = vpack.c.b16 %v2336, %v2334
      %v2427 = vpack.c.b16 %v2339, %v2337
      %v2428 = vpack.c.b16 %v2340, %v2338
      %v2429 = vpack.c.b16 %v2343, %v2341
      %v2430 = vpack.c.b16 %v2344, %v2342
      %v2431 = vpack.c.b16 %v2347, %v2345
      %v2432 = vpack.c.b16 %v2348, %v2346
      %v2433 = vpack.c.b16 %v2351, %v2349
      %v2434 = vpack.c.b16 %v2352, %v2350
      %v2435 = vpack.c.b16 %v2355, %v2353
      %v2436 = vpack.c.b16 %v2356, %v2354
      %v2437 = vpack.c.b16 %v2359, %v2357
      %v2438 = vpack.c.b16 %v2360, %v2358
      %v2439 = vpack.c.b16 %v2363, %v2361
      %v2440 = vpack.c.b16 %v2364, %v2362
      %v2441 = vpack.c.b16 %v2367, %v2365
      %v2442 = vpack.c.b16 %v2368, %v2366
      %v2443 = vpack.c.b16 %v2371, %v2369
      %v2444 = vpack.c.b16 %v2372, %v2370
      %v2445 = vpack.c.b16 %v2375, %v2373
      %v2446 = vpack.c.b16 %v2376, %v2374
      %v2447 = vpack.c.b16 %v2379, %v2377
      %v2448 = vpack.c.b16 %v2380, %v2378
      %v2449 = vpack.c.b16 %v2383, %v2381
      %v2450 = vpack.c.b16 %v2384, %v2382
      %v2451 = vpack.c.b16 %v2387, %v2385
      %v2452 = vpack.c.b16 %v2388, %v2386
      %2517 = vmatpush.bf16.msra.mxu0 %v2403
      %2518 = vmatpush.bf16.msra.mxu0 %v2401
      %2519 = vmatpush.bf16.msra.mxu0 %v2399
      %2520 = vmatpush.bf16.msra.mxu0 %v2397
      %2521 = vmatpush.bf16.msra.mxu0 %v2395
      %2522 = vmatpush.bf16.msra.mxu0 %v2393
      %2523 = vmatpush.bf16.msra.mxu0 %v2391
      %2524 = vmatpush.bf16.msra.mxu0 %v2389
      %2525 = vmatmul.bf16.gmra.mxu0 %v2123
      %v2526 = vpop.f32.mrf.mxu0
      %v2527 = vadd.f32 %v2193, %v2526
      %v2528 = vpop.f32.mrf.mxu0
      %2529 = vdwg.mxu0
      %2530 = vmatpush.bf16.msra.mxu0 %v2419
      %2531 = vmatpush.bf16.msra.mxu0 %v2417
      %2532 = vmatpush.bf16.msra.mxu0 %v2415
      %2533 = vmatpush.bf16.msra.mxu0 %v2413
      %2534 = vmatpush.bf16.msra.mxu0 %v2411
      %2535 = vmatpush.bf16.msra.mxu0 %v2409
      %2536 = vmatpush.bf16.msra.mxu0 %v2407
      %2537 = vmatpush.bf16.msra.mxu0 %v2405
      %2538 = vmatmul.bf16.gmra.mxu0 %v2124
      %v2539 = vpop.f32.mrf.mxu0
      %v2540 = vadd.f32 %v2527, %v2539
      %v2541 = vpop.f32.mrf.mxu0
      %2542 = vdwg.mxu0
      %2543 = vmatpush.bf16.msra.mxu0 %v2435
      %2544 = vmatpush.bf16.msra.mxu0 %v2433
      %2545 = vmatpush.bf16.msra.mxu0 %v2431
      %2546 = vmatpush.bf16.msra.mxu0 %v2429
      %2547 = vmatpush.bf16.msra.mxu0 %v2427
      %2548 = vmatpush.bf16.msra.mxu0 %v2425
      %2549 = vmatpush.bf16.msra.mxu0 %v2423
      %2550 = vmatpush.bf16.msra.mxu0 %v2421
      %2551 = vmatmul.bf16.gmra.mxu0 %v2125
      %v2552 = vpop.f32.mrf.mxu0
      %v2553 = vadd.f32 %v2540, %v2552
      %v2554 = vpop.f32.mrf.mxu0
      %2555 = vdwg.mxu0
      %2556 = vmatpush.bf16.msra.mxu0 %v2451
      %2557 = vmatpush.bf16.msra.mxu0 %v2449
      %2558 = vmatpush.bf16.msra.mxu0 %v2447
      %2559 = vmatpush.bf16.msra.mxu0 %v2445
      %2560 = vmatpush.bf16.msra.mxu0 %v2443
      %2561 = vmatpush.bf16.msra.mxu0 %v2441
      %2562 = vmatpush.bf16.msra.mxu0 %v2439
      %2563 = vmatpush.bf16.msra.mxu0 %v2437
      %2564 = vmatmul.bf16.gmra.mxu0 %v2126
      %v2565 = vpop.f32.mrf.mxu0
      %v2566 = vadd.f32 %v2553, %v2565
      %v2567 = vpop.f32.mrf.mxu0
      %2568 = vdwg.mxu0
      %2569 = vmatpush.bf16.msra.mxu0 %v2404
      %2570 = vmatpush.bf16.msra.mxu0 %v2402
      %2571 = vmatpush.bf16.msra.mxu0 %v2400
      %2572 = vmatpush.bf16.msra.mxu0 %v2398
      %2573 = vmatpush.bf16.msra.mxu0 %v2396
      %2574 = vmatpush.bf16.msra.mxu0 %v2394
      %2575 = vmatpush.bf16.msra.mxu0 %v2392
      %2576 = vmatpush.bf16.msra.mxu0 %v2390
      %2577 = vmatmul.bf16.gmra.mxu0 %v2123
      %v2578 = vpop.f32.mrf.mxu0
      %v2579 = vadd.f32 %v2194, %v2578
      %v2580 = vpop.f32.mrf.mxu0
      %2581 = vdwg.mxu0
      %2582 = vmatpush.bf16.msra.mxu0 %v2420
      %2583 = vmatpush.bf16.msra.mxu0 %v2418
      %2584 = vmatpush.bf16.msra.mxu0 %v2416
      %2585 = vmatpush.bf16.msra.mxu0 %v2414
      %2586 = vmatpush.bf16.msra.mxu0 %v2412
      %2587 = vmatpush.bf16.msra.mxu0 %v2410
      %2588 = vmatpush.bf16.msra.mxu0 %v2408
      %2589 = vmatpush.bf16.msra.mxu0 %v2406
      %2590 = vmatmul.bf16.gmra.mxu0 %v2124
      %v2591 = vpop.f32.mrf.mxu0
      %v2592 = vadd.f32 %v2579, %v2591
      %v2593 = vpop.f32.mrf.mxu0
      %2594 = vdwg.mxu0
      %2595 = vmatpush.bf16.msra.mxu0 %v2436
      %2596 = vmatpush.bf16.msra.mxu0 %v2434
      %2597 = vmatpush.bf16.msra.mxu0 %v2432
      %2598 = vmatpush.bf16.msra.mxu0 %v2430
      %2599 = vmatpush.bf16.msra.mxu0 %v2428
      %2600 = vmatpush.bf16.msra.mxu0 %v2426
      %2601 = vmatpush.bf16.msra.mxu0 %v2424
      %2602 = vmatpush.bf16.msra.mxu0 %v2422
      %2603 = vmatmul.bf16.gmra.mxu0 %v2125
      %v2604 = vpop.f32.mrf.mxu0
      %v2605 = vadd.f32 %v2592, %v2604
      %v2606 = vpop.f32.mrf.mxu0
      %2607 = vdwg.mxu0
      %2608 = vmatpush.bf16.msra.mxu0 %v2452
      %2609 = vmatpush.bf16.msra.mxu0 %v2450
      %2610 = vmatpush.bf16.msra.mxu0 %v2448
      %2611 = vmatpush.bf16.msra.mxu0 %v2446
      %2612 = vmatpush.bf16.msra.mxu0 %v2444
      %2613 = vmatpush.bf16.msra.mxu0 %v2442
      %2614 = vmatpush.bf16.msra.mxu0 %v2440
      %2615 = vmatpush.bf16.msra.mxu0 %v2438
      %2616 = vmatmul.bf16.gmra.mxu0 %v2126
      %v2617 = vpop.f32.mrf.mxu0
      %v2618 = vadd.f32 %v2605, %v2617
      %v2619 = vpop.f32.mrf.mxu0
      %2620 = vdwg.mxu0
      %vm2621 = vcmp.gt.f32.partialorder %v2566, 0.0
      %vm2622 = vcmp.gt.f32.partialorder %v2618, 0.0
      %v2623 = vmul.f32 %v2566, 0.2
      %v2624 = vmul.f32 %v2618, 0.2
      %v2625 = vsel %vm2621, %v2566, %v2623
      %v2626 = vsel %vm2622, %v2618, %v2624
      %v2627 = vld [vmem:[%s5] sm:$0x3]
      %v2629 = vperm.slane %v2627, 0
      %v2630 = vperm.slane %v2627, 1
      %v2633 = vmul.f32 %v2625, %v2629
      %v2634 = vmul.f32 %v2626, %v2630
      %v2635 = vsel %vm2083, %v2633, 0.0
      %v2636 = vsel %vm2083, %v2634, 0.0
      %v2637 = vadd.f32 %v2635, %v2636
      %2638 = vadd.xlane.f32.xlu0 %v2637
      %v2639 = vpop.xlane.xlu0 %2638
      %v2640 = vld [vmem:[#allocation3] sm:$0x1]
      %v2642 = vperm.slane %v2640, 0
      %v2644 = vadd.f32 %v2639, %v2642
      %v2645 = vsub.f32 0.0, %v2644
      %v2646 = vmul.f32 %v2645, 1.442695
      %v2647 = vpow.pop %v2646
      %v2648 = vadd.f32 %v2647, 1.0
      %v2649 = vrcp.pop %v2648
      %vm2650 = vcmask 1024
      %2651 = vst.msk [vmem:[%s7] sm:$0x3] %vm2650, %v2649
    $region53: #{tpu_custom_call.1} parent=1 // pred_fallthru
      _
    // Predicated region
    $region54: #{tpu_custom_call.1} parent=1 // pred_check
      _
    $region55: #{tpu_custom_call.1} parent=1 // pred_check_branch
      %2653 = sbr.rel (0) target = $region57
    $region56: #{tpu_custom_call.1} parent=1 // pred_region
      _
    $region57: #{tpu_custom_call.1} parent=1 // pred_fallthru
      _
    // Predicated region
    $region58: #{tpu_custom_call.1} parent=1 // pred_check
      _
    $region59: #{tpu_custom_call.1} parent=1 // pred_check_branch
      %2655 = sbr.rel (0) target = $region61
    $region60: #{tpu_custom_call.1} parent=1 // pred_region
      _
    $region61: #{tpu_custom_call.1} parent=1 // pred_fallthru
      _
    %2656 = vsyncpa [#allocation5], 1
    %2657 = vsyncpa [#allocation7], 1
    %2658 = vsyncpa [#allocation10], 1

</llo_original>
